<compile_context>
chip_gen: v6e
topology: v6e:2x2x1
jax: 0.10.0
libtpu: 0.0.40
codegen_flags: <defaults>
</compile_context>

<pallas_src>
import functools

import jax
import jax.numpy as jnp
from jax.experimental import pallas as pl
from jax.experimental.pallas import tpu as pltpu

OUT_H, OUT_W = 224, 224
MAX_BATCH = 32        # cap on planes processed per grid step
MIN_GRID_STEPS = 4    # keep the pipeline (and v7x's 2nd TensorCore) busy


def _pool_matrix(in_size: int, out_size: int) -> jnp.ndarray:
    """(in_size, out_size) matrix M with M[w, i] = 1/len(bin_i) if w in bin_i.

    Bin boundaries follow PyTorch's adaptive-pool integer arithmetic:
        start_i = (i * in) // out ;  end_i = ceil((i + 1) * in / out)
    """
    idx = jnp.arange(out_size, dtype=jnp.int32)
    starts = (idx * in_size) // out_size
    ends = ((idx + 1) * in_size + out_size - 1) // out_size
    pos = jnp.arange(in_size, dtype=jnp.int32)[:, None]
    mask = (pos >= starts[None, :]) & (pos < ends[None, :])
    counts = (ends - starts).astype(jnp.float32)
    return mask.astype(jnp.float32) / counts[None, :]


def _vmem_capacity_bytes() -> int:
    """Per-core VMEM capacity; falls back to the v7x value (safe everywhere)."""
    try:
        return int(pltpu.get_tpu_info().vmem_capacity_bytes)
    except Exception:
        return 64 * 1024 * 1024


def _tile_bytes(rows: int, cols: int, itemsize: int) -> int:
    """VMEM footprint of a (rows, cols) tile with dtype-dependent sublane padding."""
    sub = 8 * max(1, 4 // max(1, itemsize))   # f32 -> 8, bf16 -> 16, int8 -> 32
    pr = ((rows + sub - 1) // sub) * sub
    pc = ((cols + 127) // 128) * 128
    return pr * pc * itemsize


def _choose_batch(nc, hin, win, in_isz, cmp_isz, out_isz, budget, n_const_buf):
    """Pick planes-per-step b (a divisor of nc) and return (b, VMEM estimate bytes)."""
    fixed = n_const_buf * (_tile_bytes(OUT_H, hin, 4)            # pht (f32)
                           + _tile_bytes(win, OUT_W, cmp_isz))   # pw (compute dtype)
    per_plane = (
        2 * _tile_bytes(hin, win, in_isz)            # input block, double-buffered
        + 2 * _tile_bytes(OUT_H, OUT_W, out_isz)     # output block, double-buffered
        + (_tile_bytes(hin, win, cmp_isz) if cmp_isz != in_isz else 0)  # in-kernel cast
        + _tile_bytes(hin, OUT_W, 4)                 # W-pool intermediate (f32)
        + _tile_bytes(OUT_H, hin, 4)                 # broadcast pht (f32)
        + _tile_bytes(OUT_H, OUT_W, 4)               # batched H-pool result (f32)
    )
    b = max(1, min(nc, MAX_BATCH, (budget - fixed) // per_plane))
    # Guarantee a multi-step grid so pipelining / megacore sharding engage.
    b = int(min(b, max(1, nc // MIN_GRID_STEPS)))
    while nc % b:                                    # keep the grid exact
        b -= 1
    return b, int(fixed + b * per_plane)


def _adaptive_pool_kernel(x_ref, pht_ref, pw_ref, o_ref, *, compute_dtype):
    # x_ref:   (B, Hin, Win)    B image planes, native input dtype
    # pht_ref: (OUT_H, Hin)     P_h^T, f32
    # pw_ref:  (Win, OUT_W)     P_w, compute dtype
    # o_ref:   (B, OUT_H, OUT_W)
    b, hin, win = x_ref.shape

    x = x_ref[...]
    if x.dtype != compute_dtype:     # only non-MXU-native inputs (ints, ...) get cast
        x = x.astype(compute_dtype)

    # W-pool first: ONE large lane-dense MXU matmul, M = B*Hin (big), N = 224.
    tmp = jnp.dot(x.reshape(b * hin, win), pw_ref[...],
                  preferred_element_type=jnp.float32)            # (B*Hin, 224) f32
    tmp = tmp.reshape(b, hin, OUT_W)

    # H-pool: one batched dot_general (batch = B, contracting = Hin) — single MXU
    # stream, no per-plane slicing of `tmp`.
    pht_b = jnp.broadcast_to(pht_ref[...][None, :, :], (b, OUT_H, hin))
    out = jax.lax.dot_general(
        pht_b, tmp,
        dimension_numbers=(((2,), (1,)), ((0,), (0,))),
        preferred_element_type=jnp.float32)                      # (B, 224, 224) f32
    o_ref[...] = out.astype(o_ref.dtype)


def adaptive_avg_pool_224(x: jnp.ndarray, *, out_dtype=None,
                          force_bf16_mxu: bool = False) -> jnp.ndarray:
    """AdaptiveAvgPool2d((224, 224)) on an NCHW tensor, computed in Pallas."""
    n, c, hin, win = x.shape
    nc = n * c
    x_flat = x.reshape(nc, hin, win)       # metadata-only reshape, no dtype cast

    if out_dtype is None:
        out_dtype = x.dtype if jnp.issubdtype(x.dtype, jnp.floating) else jnp.float32
    out_dtype = jnp.dtype(out_dtype)

    # MXU operand dtype: keep bf16 inputs (or explicit opt-in) in bf16, else f32.
    compute_dtype = jnp.bfloat16 if (x.dtype == jnp.bfloat16 or force_bf16_mxu) \
        else jnp.float32

    ph_t = _pool_matrix(hin, OUT_H).T                       # (OUT_H, Hin) f32
    pw = _pool_matrix(win, OUT_W).astype(compute_dtype)     # (Win, OUT_W)

    # Generation-aware VMEM sizing (128 MiB v5e/v6e, 64 MiB v7x per core).
    vmem_cap = _vmem_capacity_bytes()
    hard_cap = vmem_cap - 8 * 1024 * 1024          # headroom for compiler scratch
    soft_cap = min(hard_cap, 96 * 1024 * 1024)
    budget = int(0.7 * soft_cap)

    b, est = _choose_batch(
        nc, hin, win,
        jnp.dtype(x.dtype).itemsize, jnp.dtype(compute_dtype).itemsize,
        out_dtype.itemsize, budget, n_const_buf=1)
    # TODO(synk): add a K-tiled (Win-chunked) fallback for planes so large that even
    # b=1 exceeds the budget; today we only raise the limit toward capacity.
    vmem_limit = int(min(hard_cap, max(32 * 1024 * 1024, 2 * est)))

    def build(single_buffer_consts: bool):
        const_kw = {"pipeline_mode": pl.Buffered(1)} if single_buffer_consts else {}
        return pl.pallas_call(
            functools.partial(_adaptive_pool_kernel, compute_dtype=compute_dtype),
            out_shape=jax.ShapeDtypeStruct((nc, OUT_H, OUT_W), out_dtype),
            grid=(nc // b,),
            in_specs=[
                pl.BlockSpec((b, hin, win), lambda i: (i, 0, 0)),
                pl.BlockSpec((OUT_H, hin), lambda i: (0, 0), **const_kw),
                pl.BlockSpec((win, OUT_W), lambda i: (0, 0), **const_kw),
            ],
            out_specs=pl.BlockSpec((b, OUT_H, OUT_W), lambda i: (i, 0, 0)),
            compiler_params=pltpu.CompilerParams(
                dimension_semantics=("parallel",),
                vmem_limit_bytes=vmem_limit,
            ),
        )

    try:
        out = build(True)(x_flat, ph_t, pw)
    except Exception:
        # Fall back to default double-buffered constant blocks if this runtime
        # does not accept pipeline_mode=pl.Buffered(1).
        out = build(False)(x_flat, ph_t, pw)

    return out.reshape(n, c, OUT_H, OUT_W)


def myvit_forward(x: jnp.ndarray) -> jnp.ndarray:
    x = adaptive_avg_pool_224(x)
    # TODO(synk): `self.model` is an arbitrary injected nn.Module (architecture/weights
    # undefined by MyViT); left as identity. If it starts with a ViT patch-embedding,
    # fuse that matmul into this kernel to skip the (N*C, 224, 224) HBM round trip —
    # that writeback is the binding resource on every TPU generation.
    return x


if __name__ == "__main__":
    key = jax.random.PRNGKey(0)
    x = jax.random.normal(key, (2, 4, 16, 16), dtype=jnp.float32)

    y = myvit_forward(x)
    y = jax.block_until_ready(y)

    assert y.shape == (2, 4, OUT_H, OUT_W), y.shape

    # For 16 -> 224 (out % in == 0) adaptive avg pooling degenerates to replicating
    # each input pixel 14x along H and W.
    ref = jnp.repeat(jnp.repeat(x, OUT_H // 16, axis=2), OUT_W // 16, axis=3)
    assert jnp.allclose(y, ref, atol=1e-5, rtol=1e-5)

    print("KERNEL_OK")
</pallas_src>

<mosaic_0001>
module attributes {stable_mosaic.version = 11 : i64} {
  func.func @_adaptive_pool_kernel(%arg0: i32, %arg1: memref<2x16x16xf32, #tpu.memory_space<vmem>>, %arg2: memref<224x16xf32, #tpu.memory_space<vmem>>, %arg3: memref<16x224xf32, #tpu.memory_space<vmem>>, %arg4: memref<2x224x224xf32, #tpu.memory_space<vmem>>) attributes {dimension_semantics = [#tpu.dimension_semantics<parallel>], iteration_bounds = array<i64: 4>, scalar_prefetch = 0 : i64, scratch_operands = 0 : i64, tpu.core_type = #tpu.core_type<tc>, window_params = [{transform_indices = @transform_0, window_bounds = array<i64: 2, 16, 16>}, {pipeline_mode = #tpu.pipeline_mode<synchronous>, transform_indices = @transform_1, window_bounds = array<i64: 224, 16>}, {pipeline_mode = #tpu.pipeline_mode<synchronous>, transform_indices = @transform_2, window_bounds = array<i64: 16, 224>}, {transform_indices = @transform_3, window_bounds = array<i64: 2, 224, 224>}]} {
    %c0 = arith.constant 0 : index
    %c0_0 = arith.constant 0 : index
    %c0_1 = arith.constant 0 : index
    %0 = vector.load %arg1[%c0, %c0_0, %c0_1] : memref<2x16x16xf32, #tpu.memory_space<vmem>>, vector<2x16x16xf32>
    %1 = vector.shape_cast %0 : vector<2x16x16xf32> to vector<32x16xf32>
    %c0_2 = arith.constant 0 : index
    %c0_3 = arith.constant 0 : index
    %2 = vector.load %arg3[%c0_2, %c0_3] : memref<16x224xf32, #tpu.memory_space<vmem>>, vector<16x224xf32>
    %cst = arith.constant dense<0.000000e+00> : vector<32x224xf32>
    %3 = tpu.matmul %1, %2, %cst {dimension_numbers = #tpu.dot_dimension_numbers<[1], [0], [0], [1], [0, 0, 1, 1], [], []>} : vector<32x16xf32>, vector<16x224xf32>, vector<32x224xf32> -> vector<32x224xf32>
    %4 = vector.shape_cast %3 : vector<32x224xf32> to vector<2x16x224xf32>
    %c0_4 = arith.constant 0 : index
    %c0_5 = arith.constant 0 : index
    %5 = vector.load %arg2[%c0_4, %c0_5] : memref<224x16xf32, #tpu.memory_space<vmem>>, vector<224x16xf32>
    %6 = vector.shape_cast %5 : vector<224x16xf32> to vector<1x224x16xf32>
    %7 = vector.shape_cast %6 : vector<1x224x16xf32> to vector<1x224x16xf32>
    %8 = vector.broadcast %7 : vector<1x224x16xf32> to vector<2x224x16xf32>
    %cst_6 = arith.constant dense<0.000000e+00> : vector<2x224x224xf32>
    %9 = tpu.matmul %8, %4, %cst_6 {dimension_numbers = #tpu.dot_dimension_numbers<[2], [1], [1], [2], [0, 0, 0, 1, 1, 2], [0], [0]>} : vector<2x224x16xf32>, vector<2x16x224xf32>, vector<2x224x224xf32> -> vector<2x224x224xf32>
    %c0_7 = arith.constant 0 : index
    %c0_8 = arith.constant 0 : index
    %c0_9 = arith.constant 0 : index
    %10 = vector.load %arg4[%c0_7, %c0_8, %c0_9] : memref<2x224x224xf32, #tpu.memory_space<vmem>>, vector<2x224x224xf32>
    tpu.vector_store %arg4[%c0_7, %c0_8, %c0_9], %9 {strides = array<i32>} : memref<2x224x224xf32, #tpu.memory_space<vmem>>, vector<2x224x224xf32>,
    return
  }
  func.func @transform_0(%arg0: i32) -> (i32, i32, i32) {
    %c0_i32 = arith.constant 0 : i32
    %c0_i32_0 = arith.constant 0 : i32
    %c0_i32_1 = arith.constant 0 : i32
    return %arg0, %c0_i32, %c0_i32_0 : i32, i32, i32
  }
  func.func @transform_1(%arg0: i32) -> (i32, i32) {
    %c0_i32 = arith.constant 0 : i32
    %c0_i32_0 = arith.constant 0 : i32
    %c0_i32_1 = arith.constant 0 : i32
    return %c0_i32, %c0_i32_0 : i32, i32
  }
  func.func @transform_2(%arg0: i32) -> (i32, i32) {
    %c0_i32 = arith.constant 0 : i32
    %c0_i32_0 = arith.constant 0 : i32
    %c0_i32_1 = arith.constant 0 : i32
    return %c0_i32, %c0_i32_0 : i32, i32
  }
  func.func @transform_3(%arg0: i32) -> (i32, i32, i32) {
    %c0_i32 = arith.constant 0 : i32
    %c0_i32_0 = arith.constant 0 : i32
    %c0_i32_1 = arith.constant 0 : i32
    return %arg0, %c0_i32, %c0_i32_0 : i32, i32, i32
  }
}

module attributes {stable_mosaic.version = 11 : i64} {
  func.func @_adaptive_pool_kernel(%arg0: i32, %arg1: memref<2x16x16xf32, #tpu.memory_space<vmem>>, %arg2: memref<224x16xf32, #tpu.memory_space<vmem>>, %arg3: memref<16x224xf32, #tpu.memory_space<vmem>>, %arg4: memref<2x224x224xf32, #tpu.memory_space<vmem>>) attributes {dimension_semantics = [#tpu.dimension_semantics<parallel>], iteration_bounds = array<i64: 4>, scalar_prefetch = 0 : i64, scratch_operands = 0 : i64, tpu.core_type = #tpu.core_type<tc>, window_params = [{transform_indices = @transform_0, window_bounds = array<i64: 2, 16, 16>}, {pipeline_mode = #tpu.pipeline_mode<synchronous>, transform_indices = @transform_1, window_bounds = array<i64: 224, 16>}, {pipeline_mode = #tpu.pipeline_mode<synchronous>, transform_indices = @transform_2, window_bounds = array<i64: 16, 224>}, {transform_indices = @transform_3, window_bounds = array<i64: 2, 224, 224>}]} {
    %c0 = arith.constant 0 : index
    %c0_0 = arith.constant 0 : index
    %c0_1 = arith.constant 0 : index
    %0 = vector.load %arg1[%c0, %c0_0, %c0_1] : memref<2x16x16xf32, #tpu.memory_space<vmem>>, vector<2x16x16xf32>
    %1 = vector.shape_cast %0 : vector<2x16x16xf32> to vector<32x16xf32>
    %c0_2 = arith.constant 0 : index
    %c0_3 = arith.constant 0 : index
    %2 = vector.load %arg3[%c0_2, %c0_3] : memref<16x224xf32, #tpu.memory_space<vmem>>, vector<16x224xf32>
    %cst = arith.constant dense<0.000000e+00> : vector<32x224xf32>
    %3 = tpu.matmul %1, %2, %cst {dimension_numbers = #tpu.dot_dimension_numbers<[1], [0], [0], [1], [0, 0, 1, 1], [], []>} : vector<32x16xf32>, vector<16x224xf32>, vector<32x224xf32> -> vector<32x224xf32>
    %4 = vector.shape_cast %3 : vector<32x224xf32> to vector<2x16x224xf32>
    %c0_4 = arith.constant 0 : index
    %c0_5 = arith.constant 0 : index
    %5 = vector.load %arg2[%c0_4, %c0_5] : memref<224x16xf32, #tpu.memory_space<vmem>>, vector<224x16xf32>
    %6 = vector.shape_cast %5 : vector<224x16xf32> to vector<1x224x16xf32>
    %7 = vector.shape_cast %6 : vector<1x224x16xf32> to vector<1x224x16xf32>
    %8 = vector.broadcast %7 : vector<1x224x16xf32> to vector<2x224x16xf32>
    %cst_6 = arith.constant dense<0.000000e+00> : vector<2x224x224xf32>
    %9 = tpu.matmul %8, %4, %cst_6 {dimension_numbers = #tpu.dot_dimension_numbers<[2], [1], [1], [2], [0, 0, 0, 1, 1, 2], [0], [0]>} : vector<2x224x16xf32>, vector<2x16x224xf32>, vector<2x224x224xf32> -> vector<2x224x224xf32>
    %c0_7 = arith.constant 0 : index
    %c0_8 = arith.constant 0 : index
    %c0_9 = arith.constant 0 : index
    %10 = vector.load %arg4[%c0_7, %c0_8, %c0_9] : memref<2x224x224xf32, #tpu.memory_space<vmem>>, vector<2x224x224xf32>
    tpu.vector_store %arg4[%c0_7, %c0_8, %c0_9], %9 {strides = array<i32>} : memref<2x224x224xf32, #tpu.memory_space<vmem>>, vector<2x224x224xf32>,
    return
  }
  func.func @transform_0(%arg0: i32) -> (i32, i32, i32) {
    %c0_i32 = arith.constant 0 : i32
    %c0_i32_0 = arith.constant 0 : i32
    %c0_i32_1 = arith.constant 0 : i32
    return %arg0, %c0_i32, %c0_i32_0 : i32, i32, i32
  }
  func.func @transform_1(%arg0: i32) -> (i32, i32) {
    %c0_i32 = arith.constant 0 : i32
    %c0_i32_0 = arith.constant 0 : i32
    %c0_i32_1 = arith.constant 0 : i32
    return %c0_i32, %c0_i32_0 : i32, i32
  }
  func.func @transform_2(%arg0: i32) -> (i32, i32) {
    %c0_i32 = arith.constant 0 : i32
    %c0_i32_0 = arith.constant 0 : i32
    %c0_i32_1 = arith.constant 0 : i32
    return %c0_i32, %c0_i32_0 : i32, i32
  }
  func.func @transform_3(%arg0: i32) -> (i32, i32, i32) {
    %c0_i32 = arith.constant 0 : i32
    %c0_i32_0 = arith.constant 0 : i32
    %c0_i32_1 = arith.constant 0 : i32
    return %arg0, %c0_i32, %c0_i32_0 : i32, i32, i32
  }
}

</mosaic_0001>

<llo_original>
// kernel: tpu_custom_call.1
$region0: #{tpu_custom_call.1}
  #allocation0 [shape = 'u32[]', space=smem, size = 0x4, offset = 0x4, fixed_abs, tag = 'smem constant byte address 0x4 - core index']
  #allocation1 [shape = 'u32[144,128]{1,0:T(1,128)}', space=vmem, size = 0x12000, scoped, tag = 'internal scratch']
  %s0 = inlined_call_operand.hbm [shape: f32[8,16,16], index: 0, kind: input, shape index: {}]
  %s1 = inlined_call_operand.vmem [shape: f32[224,16], index: 1, kind: input, shape index: {}]
  %s2 = inlined_call_operand.hbm [shape: f32[16,224], index: 2, kind: input, shape index: {}]
  %s3 = inlined_call_operand.hbm [shape: f32[8,224,224], index: 3, kind: output, shape index: {}]
  %s4 = sld [smem:[#allocation0]]
  $region53: #{tpu_custom_call.1} parent=0
    _
  %s6 = ssub.s32 1, %s4
  %s7 = scalar_select 0, %s6, %s4
  $region1: #{tpu_custom_call.1} parent=0
    #allocation2 [shape = 'u8[32768]{0}', space=vmem, size = 0x8000, scoped, tag = 'input window, operand 0']
    #allocation3 [shape = 's32[2]{0}', space=sflag, size = 0x8, scoped, tag = 'scoped memory for tpu_custom_call.1']
    #allocation4 [shape = 's32[2]{0}', space=sflag, size = 0x8, scoped, tag = 'scoped memory for tpu_custom_call.1']
    #allocation5 [shape = 'u8[16384]{0}', space=vmem, size = 0x4000, scoped, tag = 'input window, operand 2, single buffered']
    #allocation6 [shape = 's32[1]{0}', space=sflag, size = 0x4, scoped, tag = 'scoped memory for tpu_custom_call.1']
    #allocation7 [shape = 'u8[917504]{0}', space=vmem, size = 0xe0000, scoped, tag = 'output window, operand 0']
    %8 = vsyncpa [#allocation3], 0
    %s9 = scalar_lea.sflag [#allocation3], 1
    %10 = vsyncpa %s9, 0
    %11 = vsyncpa [#allocation6], 0
    %12 = vsyncpa [#allocation4], 0
    %s13 = scalar_lea.sflag [#allocation4], 1
    %14 = vsyncpa %s13, 0
    loop: start=0, step=1, limit=6
    $region2: #{tpu_custom_call.1} parent=1 // loop_pre_header
      _
    $region3: #{tpu_custom_call.1} parent=1 // loop_header
      %s16 = sphi 0, %s20
      %p17 = scmp.ge.s32.totalorder %s16, 6
      %s26 = sphi 0, %s28
      %s29 = sphi 0, %s26
      %s30 = sphi 0, %s29
      %s46 = sphi 0, %s30
      %s50 = sphi 0, %s50
      %s52 = sphi 0, %s50
      %s53 = sphi 0, %s52
      %s67 = sphi 0, %s53
      %s71 = sphi 0, %s71
      %s73 = sphi 0, %s71
      %s74 = sphi 0, %s73
      %s88 = sphi 0, %s74
      %s94 = sphi 0, %s96
      %s97 = sphi 0, %s94
      %s98 = sphi 0, %s97
      %s114 = sphi 0, %s98
    $region4: #{tpu_custom_call.1} parent=1 // loop_header_branch
      %19 = sbr.rel (%p17) target = $region8
    $region5: #{tpu_custom_call.1} parent=1 // loop_body
      %s21 = ssub.s32 %s16, 1
      %s22 = ssub.s32 %s16, 2
      %s23 = sadd.s32 %s16, 1
      %s24 = ssub.s32 %s16, %s23
      %p25 = scmp.eq.s32.totalorder %s24, 0
      %s27 = sadd.s32 %s26, 1
      %s28 = scalar_select %p25, %s26, %s27
      %p31 = pneg %p25
      %p32 = scmp.eq.s32.totalorder %s16, 3
      %p33 = por %p31, %p32
      %p34 = scmp.ne.s32.totalorder %s26, %s29
      %p35 = scmp.eq.s32.totalorder %s16, 0
      %p36 = por %p34, %p35
      %p37 = scmp.ne.s32.totalorder %s26, %s29
      %p38 = scmp.eq.s32.totalorder %s21, 3
      %p39 = por %p37, %p38
      %p40 = scmp.ne.s32.totalorder %s29, %s30
      %p41 = scmp.eq.s32.totalorder %s21, 0
      %p42 = por %p40, %p41
      %p43 = scmp.ne.s32.totalorder %s29, %s30
      %p44 = scmp.eq.s32.totalorder %s22, 3
      %p45 = por %p43, %p44
      %p47 = scmp.ne.s32.totalorder %s30, %s46
      %p48 = scmp.eq.s32.totalorder %s22, 0
      %p49 = por %p47, %p48
      %s51 = sadd.s32 %s50, 1
      %p54 = scmp.eq.s32.totalorder %s16, 3
      %p55 = scmp.ne.s32.totalorder %s50, %s52
      %p56 = scmp.eq.s32.totalorder %s16, 0
      %p57 = por %p55, %p56
      %p58 = scmp.ne.s32.totalorder %s50, %s52
      %p59 = scmp.eq.s32.totalorder %s21, 3
      %p60 = por %p58, %p59
      %p61 = scmp.ne.s32.totalorder %s52, %s53
      %p62 = scmp.eq.s32.totalorder %s21, 0
      %p63 = por %p61, %p62
      %p64 = scmp.ne.s32.totalorder %s52, %s53
      %p65 = scmp.eq.s32.totalorder %s22, 3
      %p66 = por %p64, %p65
      %p68 = scmp.ne.s32.totalorder %s53, %s67
      %p69 = scmp.eq.s32.totalorder %s22, 0
      %p70 = por %p68, %p69
      %s72 = sadd.s32 %s71, 1
      %p75 = scmp.eq.s32.totalorder %s16, 3
      %p76 = scmp.ne.s32.totalorder %s71, %s73
      %p77 = scmp.eq.s32.totalorder %s16, 0
      %p78 = por %p76, %p77
      %p79 = scmp.ne.s32.totalorder %s71, %s73
      %p80 = scmp.eq.s32.totalorder %s21, 3
      %p81 = por %p79, %p80
      %p82 = scmp.ne.s32.totalorder %s73, %s74
      %p83 = scmp.eq.s32.totalorder %s21, 0
      %p84 = por %p82, %p83
      %p85 = scmp.ne.s32.totalorder %s73, %s74
      %p86 = scmp.eq.s32.totalorder %s22, 3
      %p87 = por %p85, %p86
      %p89 = scmp.ne.s32.totalorder %s74, %s88
      %p90 = scmp.eq.s32.totalorder %s22, 0
      %p91 = por %p89, %p90
      %s92 = ssub.s32 %s16, %s23
      %p93 = scmp.eq.s32.totalorder %s92, 0
      %s95 = sadd.s32 %s94, 1
      %s96 = scalar_select %p93, %s94, %s95
      %p99 = pneg %p93
      %p100 = scmp.eq.s32.totalorder %s16, 3
      %p101 = por %p99, %p100
      %p102 = scmp.ne.s32.totalorder %s94, %s97
      %p103 = scmp.eq.s32.totalorder %s16, 0
      %p104 = por %p102, %p103
      %p105 = scmp.ne.s32.totalorder %s94, %s97
      %p106 = scmp.eq.s32.totalorder %s21, 3
      %p107 = por %p105, %p106
      %p108 = scmp.ne.s32.totalorder %s97, %s98
      %p109 = scmp.eq.s32.totalorder %s21, 0
      %p110 = por %p108, %p109
      %p111 = scmp.ne.s32.totalorder %s97, %s98
      %p112 = scmp.eq.s32.totalorder %s22, 3
      %p113 = por %p111, %p112
      %p115 = scmp.ne.s32.totalorder %s98, %s114
      %p116 = scmp.eq.s32.totalorder %s22, 0
      %p117 = por %p115, %p116
      %p118 = scmp.le.s32.totalorder 1, %s16
      %p119 = scmp.lt.s32.totalorder %s16, 5
      %p120 = pnand %p118, %p119
      %p121 = pneg %p120
      // Predicated region
      $region9: #{tpu_custom_call.1} parent=5 // pred_check
        _
      $region10: #{tpu_custom_call.1} parent=5 // pred_check_branch
        %123 = sbr.rel (%p120) target = $region12
      $region11: #{tpu_custom_call.1} parent=5 // pred_region
        %s124 = ssub.s32 %s16, 1
        // Predicated region
        $region13: #{tpu_custom_call.1} parent=11 // pred_check
          %p125 = pneg %p63
        $region14: #{tpu_custom_call.1} parent=11 // pred_check_branch
          %127 = sbr.rel (%p125) target = $region16
        $region15: #{tpu_custom_call.1} parent=11 // pred_region
          _
        $region16: #{tpu_custom_call.1} parent=11 // pred_fallthru
          _
        // Predicated region
        $region17: #{tpu_custom_call.1} parent=11 // pred_check
          %p128 = pneg %p84
        $region18: #{tpu_custom_call.1} parent=11 // pred_check_branch
          %130 = sbr.rel (%p128) target = $region20
        $region19: #{tpu_custom_call.1} parent=11 // pred_region
          %s132 = ssub.s32 512, 512
          %133 = vsyncadd [#allocation6], %s132
          %s134 = sshll.u32 [#allocation5], 4
          %s135 = int_to_ptr.vmem [resolvable:$true] %s134
          %140 = dma.hbm_to_vmem [thread:$0]  %s2, 512, %s135, [#allocation6], 256, 256, 16
        $region20: #{tpu_custom_call.1} parent=11 // pred_fallthru
          _
      $region12: #{tpu_custom_call.1} parent=5 // pred_fallthru
        _
      %p141 = scmp.lt.s32.totalorder %s16, 4
      // Predicated region
      $region21: #{tpu_custom_call.1} parent=5 // pred_check
        %p142 = pneg %p141
      $region22: #{tpu_custom_call.1} parent=5 // pred_check_branch
        %144 = sbr.rel (%p142) target = $region24
      $region23: #{tpu_custom_call.1} parent=5 // pred_region
        // Predicated region
        $region25: #{tpu_custom_call.1} parent=23 // pred_check
          %p145 = pneg %p36
        $region26: #{tpu_custom_call.1} parent=23 // pred_check_branch
          %147 = sbr.rel (%p145) target = $region28
        $region27: #{tpu_custom_call.1} parent=23 // pred_region
          %s148 = sand.u32 %s26, 1
          %s149 = scalar_lea.sflag [#allocation3], %s148
          %s150 = sand.u32 %s26, 1
          %s151 = smul.addr %s150, 32
          %s152 = scalar_lea.vmem [#allocation2], %s151
          %s153 = smul.u32 2, %s16
          %s155 = ssub.s32 512, 512
          %156 = vsyncadd %s149, %s155
          %s157 = smul.addr %s153, 2
          %s158 = smul.addr %s157, 128
          %s159 = scalar_lea.hbm %s0, %s158
          %s160 = sshll.u32 %s152, 4
          %s161 = int_to_ptr.vmem [resolvable:$true] %s160
          %166 = dma.hbm_to_vmem [thread:$0]  %s159, 512, %s161, %s149, 128, 128, 8
        $region28: #{tpu_custom_call.1} parent=23 // pred_fallthru
          _
      $region24: #{tpu_custom_call.1} parent=5 // pred_fallthru
        _
      %p167 = scmp.le.s32.totalorder 1, %s16
      %p168 = scmp.lt.s32.totalorder %s16, 5
      %p169 = pnand %p167, %p168
      %p170 = pneg %p169
      // Predicated region
      $region29: #{tpu_custom_call.1} parent=5 // pred_check
        _
      $region30: #{tpu_custom_call.1} parent=5 // pred_check_branch
        %172 = sbr.rel (%p169) target = $region32
      $region31: #{tpu_custom_call.1} parent=5 // pred_region
        %s173 = ssub.s32 %s16, 1
        %s174 = sand.u32 %s29, 1
        %s175 = scalar_lea.sflag [#allocation3], %s174
        %s176 = sand.u32 %s29, 1
        %s177 = smul.addr %s176, 32
        %s178 = scalar_lea.vmem [#allocation2], %s177
        // Predicated region
        $region33: #{tpu_custom_call.1} parent=31 // pred_check
          %p179 = pneg %p42
        $region34: #{tpu_custom_call.1} parent=31 // pred_check_branch
          %181 = sbr.rel (%p179) target = $region36
        $region35: #{tpu_custom_call.1} parent=31 // pred_region
          %182 = dma.done %s175, 512
        $region36: #{tpu_custom_call.1} parent=31 // pred_fallthru
          _
        // Predicated region
        $region37: #{tpu_custom_call.1} parent=31 // pred_check
          %p183 = pneg %p84
        $region38: #{tpu_custom_call.1} parent=31 // pred_check_branch
          %185 = sbr.rel (%p183) target = $region40
        $region39: #{tpu_custom_call.1} parent=31 // pred_region
          %186 = dma.done [#allocation6], 512
        $region40: #{tpu_custom_call.1} parent=31 // pred_fallthru
          _
        %s187 = sand.u32 %s29, 1
        %s188 = scalar_lea.sflag [#allocation3], %s187
        %s189 = sand.u32 %s29, 1
        %s190 = smul.addr %s189, 32
        %s191 = scalar_lea.vmem [#allocation2], %s190
        %p192 = pneg %p42
        %p193 = pneg %p39
        %p194 = pneg %p63
        %p195 = pneg %p60
        %p196 = pneg %p84
        %p197 = pneg %p81
        %p198 = pneg %p110
        %p199 = pneg %p107
        %s200 = sand.u32 %s97, 1
        %s201 = scalar_lea.sflag [#allocation4], %s200
        %s202 = sand.u32 %s97, 1
        %s203 = smul.addr %s202, 896
        %s204 = scalar_lea.vmem [#allocation7], %s203
        %s205 = smul.u32 2, %s21
        %s206 = smul.u32 2, %s21
        %v207 = vld [vmem:[%s178] sm:$0xff]
        %v208 = vld [vmem:[%s178 + $0x8] sm:$0xff]
        %v209 = vld [vmem:[%s178 + $0x10] sm:$0xff]
        %v210 = vld [vmem:[%s178 + $0x18] sm:$0xff]
        %v211 = vld [vmem:[#allocation5] sm:$0xff]
        %v212 = vld [vmem:[#allocation5 + $0x8] sm:$0xff]
        %v213 = vld [vmem:[#allocation5 + $0x10] sm:$0xff]
        %v214 = vld [vmem:[#allocation5 + $0x18] sm:$0xff]
        %vm215 = vcmask 130048
        %v217 = vsel %vm215, %v207, 0
        %v220 = vsel %vm215, %v208, 0
        %v223 = vsel %vm215, %v209, 0
        %v226 = vsel %vm215, %v210, 0
        %228 = vmatprep.subr.mxu0 0.0
        %229 = vmatpush1.msra.mxu0 0.0
        %230 = vmatprep.subr.mxu0 0.0
        %231 = vmatpush1.msra.mxu0 0.0
        %232 = vmatprep.subr.mxu0 0.0
        %233 = vmatpush1.msra.mxu0 0.0
        %234 = vmatprep.subr.mxu0 0.0
        %235 = vmatpush1.msra.mxu0 0.0
        %236 = vmatprep.subr.mxu0 0.0
        %237 = vmatpush1.msra.mxu0 0.0
        %238 = vmatprep.subr.mxu0 0.0
        %239 = vmatpush1.msra.mxu0 0.0
        %240 = vmatprep.subr.mxu0 0.0
        %241 = vmatpush1.msra.mxu0 0.0
        %242 = vmatprep.subr.mxu0 0.0
        %243 = vmatpush1.msra.mxu0 0.0
        %244 = vmatprep.subr.mxu0 0.0
        %245 = vmatpush1.msra.mxu0 0.0
        %246 = vmatprep.subr.mxu0 0.0
        %247 = vmatpush1.msra.mxu0 0.0
        %248 = vmatprep.subr.mxu0 0.0
        %249 = vmatpush1.msra.mxu0 0.0
        %250 = vmatprep.subr.mxu0 0.0
        %251 = vmatpush1.msra.mxu0 0.0
        %252 = vmatprep.subr.mxu0 0.0
        %253 = vmatpush1.msra.mxu0 0.0
        %254 = vmatprep.subr.mxu0 0.0
        %255 = vmatpush1.msra.mxu0 0.0
        %256 = vmatprep.subr.mxu0 %v214
        %257 = vmatpush1.msra.mxu0 %v213
        %258 = vmatprep.subr.mxu0 %v212
        %259 = vmatpush1.msra.mxu0 %v211
        %260 = vmatprep.subr.mxu0 0.0
        %261 = vmatpush2.msra.mxu0 0.0
        %262 = vmatprep.subr.mxu0 0.0
        %263 = vmatpush2.msra.mxu0 0.0
        %264 = vmatprep.subr.mxu0 0.0
        %265 = vmatpush2.msra.mxu0 0.0
        %266 = vmatprep.subr.mxu0 0.0
        %267 = vmatpush2.msra.mxu0 0.0
        %268 = vmatprep.subr.mxu0 0.0
        %269 = vmatpush2.msra.mxu0 0.0
        %270 = vmatprep.subr.mxu0 0.0
        %271 = vmatpush2.msra.mxu0 0.0
        %272 = vmatprep.subr.mxu0 0.0
        %273 = vmatpush2.msra.mxu0 0.0
        %274 = vmatprep.subr.mxu0 0.0
        %275 = vmatpush2.msra.mxu0 0.0
        %276 = vmatprep.subr.mxu0 0.0
        %277 = vmatpush2.msra.mxu0 0.0
        %278 = vmatprep.subr.mxu0 0.0
        %279 = vmatpush2.msra.mxu0 0.0
        %280 = vmatprep.subr.mxu0 0.0
        %281 = vmatpush2.msra.mxu0 0.0
        %282 = vmatprep.subr.mxu0 0.0
        %283 = vmatpush2.msra.mxu0 0.0
        %284 = vmatprep.subr.mxu0 0.0
        %285 = vmatpush2.msra.mxu0 0.0
        %286 = vmatprep.subr.mxu0 0.0
        %287 = vmatpush2.msra.mxu0 0.0
        %288 = vmatprep.subr.mxu0 0.0
        %289 = vmatpush2.msra.mxu0 0.0
        %290 = vmatprep.subr.mxu0 0.0
        %291 = vmatpush2.msra.mxu0 0.0
        %292 = vmatprep.mubr.f32.mxu0 0.0
        %293 = vmatmul.mubr.f32.gmra.mxu0 %v217
        %v294 = vpop.f32.mrf.mxu0
        %v295 = vadd.f32 0.0, %v294
        %v296 = vpop.f32.mrf.mxu0
        %v297 = vadd.f32 0.0, %v296
        %298 = vmatprep.mubr.f32.mxu0 0.0
        %299 = vmatmul.mubr.f32.gmra.mxu0 %v220
        %v300 = vpop.f32.mrf.mxu0
        %v301 = vadd.f32 0.0, %v300
        %v302 = vpop.f32.mrf.mxu0
        %v303 = vadd.f32 0.0, %v302
        %304 = vmatprep.mubr.f32.mxu0 0.0
        %305 = vmatmul.mubr.f32.gmra.mxu0 %v223
        %v306 = vpop.f32.mrf.mxu0
        %v307 = vadd.f32 0.0, %v306
        %v308 = vpop.f32.mrf.mxu0
        %v309 = vadd.f32 0.0, %v308
        %310 = vmatprep.mubr.f32.mxu0 0.0
        %311 = vmatmul.mubr.f32.gmra.mxu0 %v226
        %v312 = vpop.f32.mrf.mxu0
        %v313 = vadd.f32 0.0, %v312
        %v314 = vpop.f32.mrf.mxu0
        %v315 = vadd.f32 0.0, %v314
        %316 = vdwg.mxu0
        %v317 = vld [vmem:[%s1] sm:$0xff]
        %v318 = vld [vmem:[%s1 + $0x8] sm:$0xff]
        %v319 = vld [vmem:[%s1 + $0x10] sm:$0xff]
        %v320 = vld [vmem:[%s1 + $0x18] sm:$0xff]
        %v321 = vld [vmem:[%s1 + $0x20] sm:$0xff]
        %v322 = vld [vmem:[%s1 + $0x28] sm:$0xff]
        %v323 = vld [vmem:[%s1 + $0x30] sm:$0xff]
        %v324 = vld [vmem:[%s1 + $0x38] sm:$0xff]
        %v325 = vld [vmem:[%s1 + $0x40] sm:$0xff]
        %v326 = vld [vmem:[%s1 + $0x48] sm:$0xff]
        %v327 = vld [vmem:[%s1 + $0x50] sm:$0xff]
        %v328 = vld [vmem:[%s1 + $0x58] sm:$0xff]
        %v329 = vld [vmem:[%s1 + $0x60] sm:$0xff]
        %v330 = vld [vmem:[%s1 + $0x68] sm:$0xff]
        %v331 = vld [vmem:[%s1 + $0x70] sm:$0xff]
        %v332 = vld [vmem:[%s1 + $0x78] sm:$0xff]
        %v333 = vld [vmem:[%s1 + $0x80] sm:$0xff]
        %v334 = vld [vmem:[%s1 + $0x88] sm:$0xff]
        %v335 = vld [vmem:[%s1 + $0x90] sm:$0xff]
        %v336 = vld [vmem:[%s1 + $0x98] sm:$0xff]
        %v337 = vld [vmem:[%s1 + $0xa0] sm:$0xff]
        %v338 = vld [vmem:[%s1 + $0xa8] sm:$0xff]
        %v339 = vld [vmem:[%s1 + $0xb0] sm:$0xff]
        %v340 = vld [vmem:[%s1 + $0xb8] sm:$0xff]
        %v341 = vld [vmem:[%s1 + $0xc0] sm:$0xff]
        %v342 = vld [vmem:[%s1 + $0xc8] sm:$0xff]
        %v343 = vld [vmem:[%s1 + $0xd0] sm:$0xff]
        %v344 = vld [vmem:[%s1 + $0xd8] sm:$0xff]
        %v346 = vsel %vm215, %v317, 0
        %v349 = vsel %vm215, %v318, 0
        %v352 = vsel %vm215, %v319, 0
        %v355 = vsel %vm215, %v320, 0
        %v358 = vsel %vm215, %v321, 0
        %v361 = vsel %vm215, %v322, 0
        %v364 = vsel %vm215, %v323, 0
        %v367 = vsel %vm215, %v324, 0
        %v370 = vsel %vm215, %v325, 0
        %v373 = vsel %vm215, %v326, 0
        %v376 = vsel %vm215, %v327, 0
        %v379 = vsel %vm215, %v328, 0
        %v382 = vsel %vm215, %v329, 0
        %v385 = vsel %vm215, %v330, 0
        %v388 = vsel %vm215, %v331, 0
        %v391 = vsel %vm215, %v332, 0
        %v394 = vsel %vm215, %v333, 0
        %v397 = vsel %vm215, %v334, 0
        %v400 = vsel %vm215, %v335, 0
        %v403 = vsel %vm215, %v336, 0
        %v406 = vsel %vm215, %v337, 0
        %v409 = vsel %vm215, %v338, 0
        %v412 = vsel %vm215, %v339, 0
        %v415 = vsel %vm215, %v340, 0
        %v418 = vsel %vm215, %v341, 0
        %v421 = vsel %vm215, %v342, 0
        %v424 = vsel %vm215, %v343, 0
        %v427 = vsel %vm215, %v344, 0
        %429 = vmatprep.subr.mxu0 0.0
        %430 = vmatpush1.msra.mxu0 0.0
        %431 = vmatprep.subr.mxu0 0.0
        %432 = vmatpush1.msra.mxu0 0.0
        %433 = vmatprep.subr.mxu0 0.0
        %434 = vmatpush1.msra.mxu0 0.0
        %435 = vmatprep.subr.mxu0 0.0
        %436 = vmatpush1.msra.mxu0 0.0
        %437 = vmatprep.subr.mxu0 0.0
        %438 = vmatpush1.msra.mxu0 0.0
        %439 = vmatprep.subr.mxu0 0.0
        %440 = vmatpush1.msra.mxu0 0.0
        %441 = vmatprep.subr.mxu0 0.0
        %442 = vmatpush1.msra.mxu0 0.0
        %443 = vmatprep.subr.mxu0 0.0
        %444 = vmatpush1.msra.mxu0 0.0
        %445 = vmatprep.subr.mxu0 0.0
        %446 = vmatpush1.msra.mxu0 0.0
        %447 = vmatprep.subr.mxu0 0.0
        %448 = vmatpush1.msra.mxu0 0.0
        %449 = vmatprep.subr.mxu0 0.0
        %450 = vmatpush1.msra.mxu0 0.0
        %451 = vmatprep.subr.mxu0 0.0
        %452 = vmatpush1.msra.mxu0 0.0
        %453 = vmatprep.subr.mxu0 0.0
        %454 = vmatpush1.msra.mxu0 0.0
        %455 = vmatprep.subr.mxu0 0.0
        %456 = vmatpush1.msra.mxu0 0.0
        %457 = vmatprep.subr.mxu0 %v303
        %458 = vmatpush1.msra.mxu0 %v301
        %459 = vmatprep.subr.mxu0 %v297
        %460 = vmatpush1.msra.mxu0 %v295
        %461 = vmatprep.subr.mxu0 0.0
        %462 = vmatpush2.msra.mxu0 0.0
        %463 = vmatprep.subr.mxu0 0.0
        %464 = vmatpush2.msra.mxu0 0.0
        %465 = vmatprep.subr.mxu0 0.0
        %466 = vmatpush2.msra.mxu0 0.0
        %467 = vmatprep.subr.mxu0 0.0
        %468 = vmatpush2.msra.mxu0 0.0
        %469 = vmatprep.subr.mxu0 0.0
        %470 = vmatpush2.msra.mxu0 0.0
        %471 = vmatprep.subr.mxu0 0.0
        %472 = vmatpush2.msra.mxu0 0.0
        %473 = vmatprep.subr.mxu0 0.0
        %474 = vmatpush2.msra.mxu0 0.0
        %475 = vmatprep.subr.mxu0 0.0
        %476 = vmatpush2.msra.mxu0 0.0
        %477 = vmatprep.subr.mxu0 0.0
        %478 = vmatpush2.msra.mxu0 0.0
        %479 = vmatprep.subr.mxu0 0.0
        %480 = vmatpush2.msra.mxu0 0.0
        %481 = vmatprep.subr.mxu0 0.0
        %482 = vmatpush2.msra.mxu0 0.0
        %483 = vmatprep.subr.mxu0 0.0
        %484 = vmatpush2.msra.mxu0 0.0
        %485 = vmatprep.subr.mxu0 0.0
        %486 = vmatpush2.msra.mxu0 0.0
        %487 = vmatprep.subr.mxu0 0.0
        %488 = vmatpush2.msra.mxu0 0.0
        %489 = vmatprep.subr.mxu0 0.0
        %490 = vmatpush2.msra.mxu0 0.0
        %491 = vmatprep.subr.mxu0 0.0
        %492 = vmatpush2.msra.mxu0 0.0
        %493 = vmatprep.mubr.f32.mxu0 0.0
        %494 = vmatmul.mubr.f32.gmra.mxu0 %v346
        %v495 = vpop.f32.mrf.mxu0
        %v496 = vadd.f32 0.0, %v495
        %v497 = vpop.f32.mrf.mxu0
        %v498 = vadd.f32 0.0, %v497
        %499 = vmatprep.mubr.f32.mxu0 0.0
        %500 = vmatmul.mubr.f32.gmra.mxu0 %v349
        %v501 = vpop.f32.mrf.mxu0
        %v502 = vadd.f32 0.0, %v501
        %v503 = vpop.f32.mrf.mxu0
        %v504 = vadd.f32 0.0, %v503
        %505 = vmatprep.mubr.f32.mxu0 0.0
        %506 = vmatmul.mubr.f32.gmra.mxu0 %v352
        %v507 = vpop.f32.mrf.mxu0
        %v508 = vadd.f32 0.0, %v507
        %v509 = vpop.f32.mrf.mxu0
        %v510 = vadd.f32 0.0, %v509
        %511 = vmatprep.mubr.f32.mxu0 0.0
        %512 = vmatmul.mubr.f32.gmra.mxu0 %v355
        %v513 = vpop.f32.mrf.mxu0
        %v514 = vadd.f32 0.0, %v513
        %v515 = vpop.f32.mrf.mxu0
        %v516 = vadd.f32 0.0, %v515
        %517 = vmatprep.mubr.f32.mxu0 0.0
        %518 = vmatmul.mubr.f32.gmra.mxu0 %v358
        %v519 = vpop.f32.mrf.mxu0
        %v520 = vadd.f32 0.0, %v519
        %v521 = vpop.f32.mrf.mxu0
        %v522 = vadd.f32 0.0, %v521
        %523 = vmatprep.mubr.f32.mxu0 0.0
        %524 = vmatmul.mubr.f32.gmra.mxu0 %v361
        %v525 = vpop.f32.mrf.mxu0
        %v526 = vadd.f32 0.0, %v525
        %v527 = vpop.f32.mrf.mxu0
        %v528 = vadd.f32 0.0, %v527
        %529 = vmatprep.mubr.f32.mxu0 0.0
        %530 = vmatmul.mubr.f32.gmra.mxu0 %v364
        %v531 = vpop.f32.mrf.mxu0
        %v532 = vadd.f32 0.0, %v531
        %v533 = vpop.f32.mrf.mxu0
        %v534 = vadd.f32 0.0, %v533
        %535 = vmatprep.mubr.f32.mxu0 0.0
        %536 = vmatmul.mubr.f32.gmra.mxu0 %v367
        %v537 = vpop.f32.mrf.mxu0
        %v538 = vadd.f32 0.0, %v537
        %v539 = vpop.f32.mrf.mxu0
        %v540 = vadd.f32 0.0, %v539
        %541 = vmatprep.mubr.f32.mxu0 0.0
        %542 = vmatmul.mubr.f32.gmra.mxu0 %v370
        %v543 = vpop.f32.mrf.mxu0
        %v544 = vadd.f32 0.0, %v543
        %v545 = vpop.f32.mrf.mxu0
        %v546 = vadd.f32 0.0, %v545
        %547 = vmatprep.mubr.f32.mxu0 0.0
        %548 = vmatmul.mubr.f32.gmra.mxu0 %v373
        %v549 = vpop.f32.mrf.mxu0
        %v550 = vadd.f32 0.0, %v549
        %v551 = vpop.f32.mrf.mxu0
        %v552 = vadd.f32 0.0, %v551
        %553 = vmatprep.mubr.f32.mxu0 0.0
        %554 = vmatmul.mubr.f32.gmra.mxu0 %v376
        %v555 = vpop.f32.mrf.mxu0
        %v556 = vadd.f32 0.0, %v555
        %v557 = vpop.f32.mrf.mxu0
        %v558 = vadd.f32 0.0, %v557
        %559 = vmatprep.mubr.f32.mxu0 0.0
        %560 = vmatmul.mubr.f32.gmra.mxu0 %v379
        %v561 = vpop.f32.mrf.mxu0
        %v562 = vadd.f32 0.0, %v561
        %v563 = vpop.f32.mrf.mxu0
        %v564 = vadd.f32 0.0, %v563
        %565 = vmatprep.mubr.f32.mxu0 0.0
        %566 = vmatmul.mubr.f32.gmra.mxu0 %v382
        %v567 = vpop.f32.mrf.mxu0
        %v568 = vadd.f32 0.0, %v567
        %v569 = vpop.f32.mrf.mxu0
        %v570 = vadd.f32 0.0, %v569
        %571 = vmatprep.mubr.f32.mxu0 0.0
        %572 = vmatmul.mubr.f32.gmra.mxu0 %v385
        %v573 = vpop.f32.mrf.mxu0
        %v574 = vadd.f32 0.0, %v573
        %v575 = vpop.f32.mrf.mxu0
        %v576 = vadd.f32 0.0, %v575
        %577 = vmatprep.mubr.f32.mxu0 0.0
        %578 = vmatmul.mubr.f32.gmra.mxu0 %v388
        %v579 = vpop.f32.mrf.mxu0
        %v580 = vadd.f32 0.0, %v579
        %v581 = vpop.f32.mrf.mxu0
        %v582 = vadd.f32 0.0, %v581
        %583 = vmatprep.mubr.f32.mxu0 0.0
        %584 = vmatmul.mubr.f32.gmra.mxu0 %v391
        %v585 = vpop.f32.mrf.mxu0
        %v586 = vadd.f32 0.0, %v585
        %v587 = vpop.f32.mrf.mxu0
        %v588 = vadd.f32 0.0, %v587
        %589 = vmatprep.mubr.f32.mxu0 0.0
        %590 = vmatmul.mubr.f32.gmra.mxu0 %v394
        %v591 = vpop.f32.mrf.mxu0
        %v592 = vadd.f32 0.0, %v591
        %v593 = vpop.f32.mrf.mxu0
        %v594 = vadd.f32 0.0, %v593
        %595 = vmatprep.mubr.f32.mxu0 0.0
        %596 = vmatmul.mubr.f32.gmra.mxu0 %v397
        %v597 = vpop.f32.mrf.mxu0
        %v598 = vadd.f32 0.0, %v597
        %v599 = vpop.f32.mrf.mxu0
        %v600 = vadd.f32 0.0, %v599
        %601 = vmatprep.mubr.f32.mxu0 0.0
        %602 = vmatmul.mubr.f32.gmra.mxu0 %v400
        %v603 = vpop.f32.mrf.mxu0
        %v604 = vadd.f32 0.0, %v603
        %v605 = vpop.f32.mrf.mxu0
        %v606 = vadd.f32 0.0, %v605
        %607 = vmatprep.mubr.f32.mxu0 0.0
        %608 = vmatmul.mubr.f32.gmra.mxu0 %v403
        %v609 = vpop.f32.mrf.mxu0
        %v610 = vadd.f32 0.0, %v609
        %v611 = vpop.f32.mrf.mxu0
        %v612 = vadd.f32 0.0, %v611
        %613 = vmatprep.mubr.f32.mxu0 0.0
        %614 = vmatmul.mubr.f32.gmra.mxu0 %v406
        %v615 = vpop.f32.mrf.mxu0
        %v616 = vadd.f32 0.0, %v615
        %v617 = vpop.f32.mrf.mxu0
        %v618 = vadd.f32 0.0, %v617
        %619 = vmatprep.mubr.f32.mxu0 0.0
        %620 = vmatmul.mubr.f32.gmra.mxu0 %v409
        %v621 = vpop.f32.mrf.mxu0
        %v622 = vadd.f32 0.0, %v621
        %v623 = vpop.f32.mrf.mxu0
        %v624 = vadd.f32 0.0, %v623
        %625 = vmatprep.mubr.f32.mxu0 0.0
        %626 = vmatmul.mubr.f32.gmra.mxu0 %v412
        %v627 = vpop.f32.mrf.mxu0
        %v628 = vadd.f32 0.0, %v627
        %v629 = vpop.f32.mrf.mxu0
        %v630 = vadd.f32 0.0, %v629
        %631 = vmatprep.mubr.f32.mxu0 0.0
        %632 = vmatmul.mubr.f32.gmra.mxu0 %v415
        %v633 = vpop.f32.mrf.mxu0
        %v634 = vadd.f32 0.0, %v633
        %v635 = vpop.f32.mrf.mxu0
        %v636 = vadd.f32 0.0, %v635
        %637 = vmatprep.mubr.f32.mxu0 0.0
        %638 = vmatmul.mubr.f32.gmra.mxu0 %v418
        %v639 = vpop.f32.mrf.mxu0
        %v640 = vadd.f32 0.0, %v639
        %v641 = vpop.f32.mrf.mxu0
        %v642 = vadd.f32 0.0, %v641
        %643 = vmatprep.mubr.f32.mxu0 0.0
        %644 = vmatmul.mubr.f32.gmra.mxu0 %v421
        %v645 = vpop.f32.mrf.mxu0
        %v646 = vadd.f32 0.0, %v645
        %v647 = vpop.f32.mrf.mxu0
        %v648 = vadd.f32 0.0, %v647
        %649 = vmatprep.mubr.f32.mxu0 0.0
        %650 = vmatmul.mubr.f32.gmra.mxu0 %v424
        %v651 = vpop.f32.mrf.mxu0
        %v652 = vadd.f32 0.0, %v651
        %v653 = vpop.f32.mrf.mxu0
        %v654 = vadd.f32 0.0, %v653
        %655 = vmatprep.mubr.f32.mxu0 0.0
        %656 = vmatmul.mubr.f32.gmra.mxu0 %v427
        %v657 = vpop.f32.mrf.mxu0
        %v658 = vadd.f32 0.0, %v657
        %v659 = vpop.f32.mrf.mxu0
        %v660 = vadd.f32 0.0, %v659
        %661 = vdwg.mxu0
        %662 = vmatprep.subr.mxu0 0.0
        %663 = vmatpush1.msra.mxu0 0.0
        %664 = vmatprep.subr.mxu0 0.0
        %665 = vmatpush1.msra.mxu0 0.0
        %666 = vmatprep.subr.mxu0 0.0
        %667 = vmatpush1.msra.mxu0 0.0
        %668 = vmatprep.subr.mxu0 0.0
        %669 = vmatpush1.msra.mxu0 0.0
        %670 = vmatprep.subr.mxu0 0.0
        %671 = vmatpush1.msra.mxu0 0.0
        %672 = vmatprep.subr.mxu0 0.0
        %673 = vmatpush1.msra.mxu0 0.0
        %674 = vmatprep.subr.mxu0 0.0
        %675 = vmatpush1.msra.mxu0 0.0
        %676 = vmatprep.subr.mxu0 0.0
        %677 = vmatpush1.msra.mxu0 0.0
        %678 = vmatprep.subr.mxu0 0.0
        %679 = vmatpush1.msra.mxu0 0.0
        %680 = vmatprep.subr.mxu0 0.0
        %681 = vmatpush1.msra.mxu0 0.0
        %682 = vmatprep.subr.mxu0 0.0
        %683 = vmatpush1.msra.mxu0 0.0
        %684 = vmatprep.subr.mxu0 0.0
        %685 = vmatpush1.msra.mxu0 0.0
        %686 = vmatprep.subr.mxu0 0.0
        %687 = vmatpush1.msra.mxu0 0.0
        %688 = vmatprep.subr.mxu0 0.0
        %689 = vmatpush1.msra.mxu0 0.0
        %690 = vmatprep.subr.mxu0 %v315
        %691 = vmatpush1.msra.mxu0 %v313
        %692 = vmatprep.subr.mxu0 %v309
        %693 = vmatpush1.msra.mxu0 %v307
        %694 = vmatprep.subr.mxu0 0.0
        %695 = vmatpush2.msra.mxu0 0.0
        %696 = vmatprep.subr.mxu0 0.0
        %697 = vmatpush2.msra.mxu0 0.0
        %698 = vmatprep.subr.mxu0 0.0
        %699 = vmatpush2.msra.mxu0 0.0
        %700 = vmatprep.subr.mxu0 0.0
        %701 = vmatpush2.msra.mxu0 0.0
        %702 = vmatprep.subr.mxu0 0.0
        %703 = vmatpush2.msra.mxu0 0.0
        %704 = vmatprep.subr.mxu0 0.0
        %705 = vmatpush2.msra.mxu0 0.0
        %706 = vmatprep.subr.mxu0 0.0
        %707 = vmatpush2.msra.mxu0 0.0
        %708 = vmatprep.subr.mxu0 0.0
        %709 = vmatpush2.msra.mxu0 0.0
        %710 = vmatprep.subr.mxu0 0.0
        %711 = vmatpush2.msra.mxu0 0.0
        %712 = vmatprep.subr.mxu0 0.0
        %713 = vmatpush2.msra.mxu0 0.0
        %714 = vmatprep.subr.mxu0 0.0
        %715 = vmatpush2.msra.mxu0 0.0
        %716 = vmatprep.subr.mxu0 0.0
        %717 = vmatpush2.msra.mxu0 0.0
        %718 = vmatprep.subr.mxu0 0.0
        %719 = vmatpush2.msra.mxu0 0.0
        %720 = vmatprep.subr.mxu0 0.0
        %721 = vmatpush2.msra.mxu0 0.0
        %722 = vmatprep.subr.mxu0 0.0
        %723 = vmatpush2.msra.mxu0 0.0
        %724 = vmatprep.subr.mxu0 0.0
        %725 = vmatpush2.msra.mxu0 0.0
        %726 = vmatprep.mubr.f32.mxu0 0.0
        %727 = vmatmul.mubr.f32.gmra.mxu0 %v346
        %v728 = vpop.f32.mrf.mxu0
        %v729 = vadd.f32 0.0, %v728
        %v730 = vpop.f32.mrf.mxu0
        %v731 = vadd.f32 0.0, %v730
        %732 = vmatprep.mubr.f32.mxu0 0.0
        %733 = vmatmul.mubr.f32.gmra.mxu0 %v349
        %v734 = vpop.f32.mrf.mxu0
        %v735 = vadd.f32 0.0, %v734
        %v736 = vpop.f32.mrf.mxu0
        %v737 = vadd.f32 0.0, %v736
        %738 = vmatprep.mubr.f32.mxu0 0.0
        %739 = vmatmul.mubr.f32.gmra.mxu0 %v352
        %v740 = vpop.f32.mrf.mxu0
        %v741 = vadd.f32 0.0, %v740
        %v742 = vpop.f32.mrf.mxu0
        %v743 = vadd.f32 0.0, %v742
        %744 = vmatprep.mubr.f32.mxu0 0.0
        %745 = vmatmul.mubr.f32.gmra.mxu0 %v355
        %v746 = vpop.f32.mrf.mxu0
        %v747 = vadd.f32 0.0, %v746
        %v748 = vpop.f32.mrf.mxu0
        %v749 = vadd.f32 0.0, %v748
        %750 = vmatprep.mubr.f32.mxu0 0.0
        %751 = vmatmul.mubr.f32.gmra.mxu0 %v358
        %v752 = vpop.f32.mrf.mxu0
        %v753 = vadd.f32 0.0, %v752
        %v754 = vpop.f32.mrf.mxu0
        %v755 = vadd.f32 0.0, %v754
        %756 = vmatprep.mubr.f32.mxu0 0.0
        %757 = vmatmul.mubr.f32.gmra.mxu0 %v361
        %v758 = vpop.f32.mrf.mxu0
        %v759 = vadd.f32 0.0, %v758
        %v760 = vpop.f32.mrf.mxu0
        %v761 = vadd.f32 0.0, %v760
        %762 = vmatprep.mubr.f32.mxu0 0.0
        %763 = vmatmul.mubr.f32.gmra.mxu0 %v364
        %v764 = vpop.f32.mrf.mxu0
        %v765 = vadd.f32 0.0, %v764
        %v766 = vpop.f32.mrf.mxu0
        %v767 = vadd.f32 0.0, %v766
        %768 = vmatprep.mubr.f32.mxu0 0.0
        %769 = vmatmul.mubr.f32.gmra.mxu0 %v367
        %v770 = vpop.f32.mrf.mxu0
        %v771 = vadd.f32 0.0, %v770
        %v772 = vpop.f32.mrf.mxu0
        %v773 = vadd.f32 0.0, %v772
        %774 = vmatprep.mubr.f32.mxu0 0.0
        %775 = vmatmul.mubr.f32.gmra.mxu0 %v370
        %v776 = vpop.f32.mrf.mxu0
        %v777 = vadd.f32 0.0, %v776
        %v778 = vpop.f32.mrf.mxu0
        %v779 = vadd.f32 0.0, %v778
        %780 = vmatprep.mubr.f32.mxu0 0.0
        %781 = vmatmul.mubr.f32.gmra.mxu0 %v373
        %v782 = vpop.f32.mrf.mxu0
        %v783 = vadd.f32 0.0, %v782
        %v784 = vpop.f32.mrf.mxu0
        %v785 = vadd.f32 0.0, %v784
        %786 = vmatprep.mubr.f32.mxu0 0.0
        %787 = vmatmul.mubr.f32.gmra.mxu0 %v376
        %v788 = vpop.f32.mrf.mxu0
        %v789 = vadd.f32 0.0, %v788
        %v790 = vpop.f32.mrf.mxu0
        %v791 = vadd.f32 0.0, %v790
        %792 = vmatprep.mubr.f32.mxu0 0.0
        %793 = vmatmul.mubr.f32.gmra.mxu0 %v379
        %v794 = vpop.f32.mrf.mxu0
        %v795 = vadd.f32 0.0, %v794
        %v796 = vpop.f32.mrf.mxu0
        %v797 = vadd.f32 0.0, %v796
        %798 = vmatprep.mubr.f32.mxu0 0.0
        %799 = vmatmul.mubr.f32.gmra.mxu0 %v382
        %v800 = vpop.f32.mrf.mxu0
        %v801 = vadd.f32 0.0, %v800
        %v802 = vpop.f32.mrf.mxu0
        %v803 = vadd.f32 0.0, %v802
        %804 = vmatprep.mubr.f32.mxu0 0.0
        %805 = vmatmul.mubr.f32.gmra.mxu0 %v385
        %v806 = vpop.f32.mrf.mxu0
        %v807 = vadd.f32 0.0, %v806
        %v808 = vpop.f32.mrf.mxu0
        %v809 = vadd.f32 0.0, %v808
        %810 = vmatprep.mubr.f32.mxu0 0.0
        %811 = vmatmul.mubr.f32.gmra.mxu0 %v388
        %v812 = vpop.f32.mrf.mxu0
        %v813 = vadd.f32 0.0, %v812
        %v814 = vpop.f32.mrf.mxu0
        %v815 = vadd.f32 0.0, %v814
        %816 = vmatprep.mubr.f32.mxu0 0.0
        %817 = vmatmul.mubr.f32.gmra.mxu0 %v391
        %v818 = vpop.f32.mrf.mxu0
        %v819 = vadd.f32 0.0, %v818
        %v820 = vpop.f32.mrf.mxu0
        %v821 = vadd.f32 0.0, %v820
        %822 = vmatprep.mubr.f32.mxu0 0.0
        %823 = vmatmul.mubr.f32.gmra.mxu0 %v394
        %v824 = vpop.f32.mrf.mxu0
        %v825 = vadd.f32 0.0, %v824
        %v826 = vpop.f32.mrf.mxu0
        %v827 = vadd.f32 0.0, %v826
        %828 = vmatprep.mubr.f32.mxu0 0.0
        %829 = vmatmul.mubr.f32.gmra.mxu0 %v397
        %v830 = vpop.f32.mrf.mxu0
        %v831 = vadd.f32 0.0, %v830
        %v832 = vpop.f32.mrf.mxu0
        %v833 = vadd.f32 0.0, %v832
        %834 = vmatprep.mubr.f32.mxu0 0.0
        %835 = vmatmul.mubr.f32.gmra.mxu0 %v400
        %v836 = vpop.f32.mrf.mxu0
        %v837 = vadd.f32 0.0, %v836
        %v838 = vpop.f32.mrf.mxu0
        %v839 = vadd.f32 0.0, %v838
        %840 = vmatprep.mubr.f32.mxu0 0.0
        %841 = vmatmul.mubr.f32.gmra.mxu0 %v403
        %v842 = vpop.f32.mrf.mxu0
        %v843 = vadd.f32 0.0, %v842
        %v844 = vpop.f32.mrf.mxu0
        %v845 = vadd.f32 0.0, %v844
        %846 = vmatprep.mubr.f32.mxu0 0.0
        %847 = vmatmul.mubr.f32.gmra.mxu0 %v406
        %v848 = vpop.f32.mrf.mxu0
        %v849 = vadd.f32 0.0, %v848
        %v850 = vpop.f32.mrf.mxu0
        %v851 = vadd.f32 0.0, %v850
        %852 = vmatprep.mubr.f32.mxu0 0.0
        %853 = vmatmul.mubr.f32.gmra.mxu0 %v409
        %v854 = vpop.f32.mrf.mxu0
        %v855 = vadd.f32 0.0, %v854
        %v856 = vpop.f32.mrf.mxu0
        %v857 = vadd.f32 0.0, %v856
        %858 = vmatprep.mubr.f32.mxu0 0.0
        %859 = vmatmul.mubr.f32.gmra.mxu0 %v412
        %v860 = vpop.f32.mrf.mxu0
        %v861 = vadd.f32 0.0, %v860
        %v862 = vpop.f32.mrf.mxu0
        %v863 = vadd.f32 0.0, %v862
        %864 = vmatprep.mubr.f32.mxu0 0.0
        %865 = vmatmul.mubr.f32.gmra.mxu0 %v415
        %v866 = vpop.f32.mrf.mxu0
        %v867 = vadd.f32 0.0, %v866
        %v868 = vpop.f32.mrf.mxu0
        %v869 = vadd.f32 0.0, %v868
        %870 = vmatprep.mubr.f32.mxu0 0.0
        %871 = vmatmul.mubr.f32.gmra.mxu0 %v418
        %v872 = vpop.f32.mrf.mxu0
        %v873 = vadd.f32 0.0, %v872
        %v874 = vpop.f32.mrf.mxu0
        %v875 = vadd.f32 0.0, %v874
        %876 = vmatprep.mubr.f32.mxu0 0.0
        %877 = vmatmul.mubr.f32.gmra.mxu0 %v421
        %v878 = vpop.f32.mrf.mxu0
        %v879 = vadd.f32 0.0, %v878
        %v880 = vpop.f32.mrf.mxu0
        %v881 = vadd.f32 0.0, %v880
        %882 = vmatprep.mubr.f32.mxu0 0.0
        %883 = vmatmul.mubr.f32.gmra.mxu0 %v424
        %v884 = vpop.f32.mrf.mxu0
        %v885 = vadd.f32 0.0, %v884
        %v886 = vpop.f32.mrf.mxu0
        %v887 = vadd.f32 0.0, %v886
        %888 = vmatprep.mubr.f32.mxu0 0.0
        %889 = vmatmul.mubr.f32.gmra.mxu0 %v427
        %v890 = vpop.f32.mrf.mxu0
        %v891 = vadd.f32 0.0, %v890
        %v892 = vpop.f32.mrf.mxu0
        %v893 = vadd.f32 0.0, %v892
        %894 = vdwg.mxu0
        %895 = vst [vmem:[%s204] sm:$0xff] %v496
        %vm896 = vcmask 785408
        %897 = vst.msk [vmem:[%s204 + $0x8] sm:$0xff] %vm896, %v498
        %898 = vst [vmem:[%s204 + $0x10] sm:$0xff] %v502
        %899 = vst.msk [vmem:[%s204 + $0x18] sm:$0xff] %vm896, %v504
        %900 = vst [vmem:[%s204 + $0x20] sm:$0xff] %v508
        %901 = vst.msk [vmem:[%s204 + $0x28] sm:$0xff] %vm896, %v510
        %902 = vst [vmem:[%s204 + $0x30] sm:$0xff] %v514
        %903 = vst.msk [vmem:[%s204 + $0x38] sm:$0xff] %vm896, %v516
        %904 = vst [vmem:[%s204 + $0x40] sm:$0xff] %v520
        %905 = vst.msk [vmem:[%s204 + $0x48] sm:$0xff] %vm896, %v522
        %906 = vst [vmem:[%s204 + $0x50] sm:$0xff] %v526
        %907 = vst.msk [vmem:[%s204 + $0x58] sm:$0xff] %vm896, %v528
        %908 = vst [vmem:[%s204 + $0x60] sm:$0xff] %v532
        %909 = vst.msk [vmem:[%s204 + $0x68] sm:$0xff] %vm896, %v534
        %910 = vst [vmem:[%s204 + $0x70] sm:$0xff] %v538
        %911 = vst.msk [vmem:[%s204 + $0x78] sm:$0xff] %vm896, %v540
        %912 = vst [vmem:[%s204 + $0x80] sm:$0xff] %v544
        %913 = vst.msk [vmem:[%s204 + $0x88] sm:$0xff] %vm896, %v546
        %914 = vst [vmem:[%s204 + $0x90] sm:$0xff] %v550
        %915 = vst.msk [vmem:[%s204 + $0x98] sm:$0xff] %vm896, %v552
        %916 = vst [vmem:[%s204 + $0xa0] sm:$0xff] %v556
        %917 = vst.msk [vmem:[%s204 + $0xa8] sm:$0xff] %vm896, %v558
        %918 = vst [vmem:[%s204 + $0xb0] sm:$0xff] %v562
        %919 = vst.msk [vmem:[%s204 + $0xb8] sm:$0xff] %vm896, %v564
        %920 = vst [vmem:[%s204 + $0xc0] sm:$0xff] %v568
        %921 = vst.msk [vmem:[%s204 + $0xc8] sm:$0xff] %vm896, %v570
        %922 = vst [vmem:[%s204 + $0xd0] sm:$0xff] %v574
        %923 = vst.msk [vmem:[%s204 + $0xd8] sm:$0xff] %vm896, %v576
        %924 = vst [vmem:[%s204 + $0xe0] sm:$0xff] %v580
        %925 = vst.msk [vmem:[%s204 + $0xe8] sm:$0xff] %vm896, %v582
        %926 = vst [vmem:[%s204 + $0xf0] sm:$0xff] %v586
        %927 = vst.msk [vmem:[%s204 + $0xf8] sm:$0xff] %vm896, %v588
        %928 = vst [vmem:[%s204 + $0x100] sm:$0xff] %v592
        %929 = vst.msk [vmem:[%s204 + $0x108] sm:$0xff] %vm896, %v594
        %930 = vst [vmem:[%s204 + $0x110] sm:$0xff] %v598
        %931 = vst.msk [vmem:[%s204 + $0x118] sm:$0xff] %vm896, %v600
        %932 = vst [vmem:[%s204 + $0x120] sm:$0xff] %v604
        %933 = vst.msk [vmem:[%s204 + $0x128] sm:$0xff] %vm896, %v606
        %934 = vst [vmem:[%s204 + $0x130] sm:$0xff] %v610
        %935 = vst.msk [vmem:[%s204 + $0x138] sm:$0xff] %vm896, %v612
        %936 = vst [vmem:[%s204 + $0x140] sm:$0xff] %v616
        %937 = vst.msk [vmem:[%s204 + $0x148] sm:$0xff] %vm896, %v618
        %938 = vst [vmem:[%s204 + $0x150] sm:$0xff] %v622
        %939 = vst.msk [vmem:[%s204 + $0x158] sm:$0xff] %vm896, %v624
        %940 = vst [vmem:[%s204 + $0x160] sm:$0xff] %v628
        %941 = vst.msk [vmem:[%s204 + $0x168] sm:$0xff] %vm896, %v630
        %942 = vst [vmem:[%s204 + $0x170] sm:$0xff] %v634
        %943 = vst.msk [vmem:[%s204 + $0x178] sm:$0xff] %vm896, %v636
        %944 = vst [vmem:[%s204 + $0x180] sm:$0xff] %v640
        %945 = vst.msk [vmem:[%s204 + $0x188] sm:$0xff] %vm896, %v642
        %946 = vst [vmem:[%s204 + $0x190] sm:$0xff] %v646
        %947 = vst.msk [vmem:[%s204 + $0x198] sm:$0xff] %vm896, %v648
        %948 = vst [vmem:[%s204 + $0x1a0] sm:$0xff] %v652
        %949 = vst.msk [vmem:[%s204 + $0x1a8] sm:$0xff] %vm896, %v654
        %950 = vst [vmem:[%s204 + $0x1b0] sm:$0xff] %v658
        %951 = vst.msk [vmem:[%s204 + $0x1b8] sm:$0xff] %vm896, %v660
        %952 = vst [vmem:[%s204 + $0x1c0] sm:$0xff] %v729
        %953 = vst.msk [vmem:[%s204 + $0x1c8] sm:$0xff] %vm896, %v731
        %954 = vst [vmem:[%s204 + $0x1d0] sm:$0xff] %v735
        %955 = vst.msk [vmem:[%s204 + $0x1d8] sm:$0xff] %vm896, %v737
        %956 = vst [vmem:[%s204 + $0x1e0] sm:$0xff] %v741
        %957 = vst.msk [vmem:[%s204 + $0x1e8] sm:$0xff] %vm896, %v743
        %958 = vst [vmem:[%s204 + $0x1f0] sm:$0xff] %v747
        %959 = vst.msk [vmem:[%s204 + $0x1f8] sm:$0xff] %vm896, %v749
        %960 = vst [vmem:[%s204 + $0x200] sm:$0xff] %v753
        %961 = vst.msk [vmem:[%s204 + $0x208] sm:$0xff] %vm896, %v755
        %962 = vst [vmem:[%s204 + $0x210] sm:$0xff] %v759
        %963 = vst.msk [vmem:[%s204 + $0x218] sm:$0xff] %vm896, %v761
        %964 = vst [vmem:[%s204 + $0x220] sm:$0xff] %v765
        %965 = vst.msk [vmem:[%s204 + $0x228] sm:$0xff] %vm896, %v767
        %966 = vst [vmem:[%s204 + $0x230] sm:$0xff] %v771
        %967 = vst.msk [vmem:[%s204 + $0x238] sm:$0xff] %vm896, %v773
        %968 = vst [vmem:[%s204 + $0x240] sm:$0xff] %v777
        %969 = vst.msk [vmem:[%s204 + $0x248] sm:$0xff] %vm896, %v779
        %970 = vst [vmem:[%s204 + $0x250] sm:$0xff] %v783
        %971 = vst.msk [vmem:[%s204 + $0x258] sm:$0xff] %vm896, %v785
        %972 = vst [vmem:[%s204 + $0x260] sm:$0xff] %v789
        %973 = vst.msk [vmem:[%s204 + $0x268] sm:$0xff] %vm896, %v791
        %974 = vst [vmem:[%s204 + $0x270] sm:$0xff] %v795
        %975 = vst.msk [vmem:[%s204 + $0x278] sm:$0xff] %vm896, %v797
        %976 = vst [vmem:[%s204 + $0x280] sm:$0xff] %v801
        %977 = vst.msk [vmem:[%s204 + $0x288] sm:$0xff] %vm896, %v803
        %978 = vst [vmem:[%s204 + $0x290] sm:$0xff] %v807
        %979 = vst.msk [vmem:[%s204 + $0x298] sm:$0xff] %vm896, %v809
        %980 = vst [vmem:[%s204 + $0x2a0] sm:$0xff] %v813
        %981 = vst.msk [vmem:[%s204 + $0x2a8] sm:$0xff] %vm896, %v815
        %982 = vst [vmem:[%s204 + $0x2b0] sm:$0xff] %v819
        %983 = vst.msk [vmem:[%s204 + $0x2b8] sm:$0xff] %vm896, %v821
        %984 = vst [vmem:[%s204 + $0x2c0] sm:$0xff] %v825
        %985 = vst.msk [vmem:[%s204 + $0x2c8] sm:$0xff] %vm896, %v827
        %986 = vst [vmem:[%s204 + $0x2d0] sm:$0xff] %v831
        %987 = vst.msk [vmem:[%s204 + $0x2d8] sm:$0xff] %vm896, %v833
        %988 = vst [vmem:[%s204 + $0x2e0] sm:$0xff] %v837
        %989 = vst.msk [vmem:[%s204 + $0x2e8] sm:$0xff] %vm896, %v839
        %990 = vst [vmem:[%s204 + $0x2f0] sm:$0xff] %v843
        %991 = vst.msk [vmem:[%s204 + $0x2f8] sm:$0xff] %vm896, %v845
        %992 = vst [vmem:[%s204 + $0x300] sm:$0xff] %v849
        %993 = vst.msk [vmem:[%s204 + $0x308] sm:$0xff] %vm896, %v851
        %994 = vst [vmem:[%s204 + $0x310] sm:$0xff] %v855
        %995 = vst.msk [vmem:[%s204 + $0x318] sm:$0xff] %vm896, %v857
        %996 = vst [vmem:[%s204 + $0x320] sm:$0xff] %v861
        %997 = vst.msk [vmem:[%s204 + $0x328] sm:$0xff] %vm896, %v863
        %998 = vst [vmem:[%s204 + $0x330] sm:$0xff] %v867
        %999 = vst.msk [vmem:[%s204 + $0x338] sm:$0xff] %vm896, %v869
        %1000 = vst [vmem:[%s204 + $0x340] sm:$0xff] %v873
        %1001 = vst.msk [vmem:[%s204 + $0x348] sm:$0xff] %vm896, %v875
        %1002 = vst [vmem:[%s204 + $0x350] sm:$0xff] %v879
        %1003 = vst.msk [vmem:[%s204 + $0x358] sm:$0xff] %vm896, %v881
        %1004 = vst [vmem:[%s204 + $0x360] sm:$0xff] %v885
        %1005 = vst.msk [vmem:[%s204 + $0x368] sm:$0xff] %vm896, %v887
        %1006 = vst [vmem:[%s204 + $0x370] sm:$0xff] %v891
        %1007 = vst.msk [vmem:[%s204 + $0x378] sm:$0xff] %vm896, %v893
        %s1008 = sand.u32 %s97, 1
        %s1009 = scalar_lea.sflag [#allocation4], %s1008
        %s1010 = sand.u32 %s97, 1
        %s1011 = smul.addr %s1010, 896
        %s1012 = scalar_lea.vmem [#allocation7], %s1011
        // Predicated region
        $region41: #{tpu_custom_call.1} parent=31 // pred_check
          %p1013 = pneg %p107
        $region42: #{tpu_custom_call.1} parent=31 // pred_check_branch
          %1015 = sbr.rel (%p1013) target = $region44
        $region43: #{tpu_custom_call.1} parent=31 // pred_region
          %s1016 = smul.u32 2, %s21
          %s1018 = ssub.s32 14336, 14336
          %1019 = vsyncadd %s1009, %s1018
          %s1020 = smul.addr %s1016, 56
          %s1021 = smul.addr %s1020, 128
          %s1022 = scalar_lea.hbm %s3, %s1021
          %s1023 = sshll.u32 %s1012, 4
          %s1024 = int_to_ptr.vmem [resolvable:$true] %s1023
          %1029 = dma.vmem_to_hbm [thread:$0]  %s1024, 14336, %s1022, %s1009, 256, 256, 16
        $region44: #{tpu_custom_call.1} parent=31 // pred_fallthru
          _
      $region32: #{tpu_custom_call.1} parent=5 // pred_fallthru
        _
      %p1030 = scmp.le.s32.totalorder 2, %s16
      // Predicated region
      $region45: #{tpu_custom_call.1} parent=5 // pred_check
        %p1031 = pneg %p1030
      $region46: #{tpu_custom_call.1} parent=5 // pred_check_branch
        %1033 = sbr.rel (%p1031) target = $region48
      $region47: #{tpu_custom_call.1} parent=5 // pred_region
        %s1034 = ssub.s32 %s16, 2
        // Predicated region
        $region49: #{tpu_custom_call.1} parent=47 // pred_check
          %p1035 = pneg %p113
        $region50: #{tpu_custom_call.1} parent=47 // pred_check_branch
          %1037 = sbr.rel (%p1035) target = $region52
        $region51: #{tpu_custom_call.1} parent=47 // pred_region
          %s1038 = sand.u32 %s98, 1
          %s1039 = scalar_lea.sflag [#allocation4], %s1038
          %s1040 = sand.u32 %s98, 1
          %s1041 = smul.addr %s1040, 896
          %s1042 = scalar_lea.vmem [#allocation7], %s1041
          %1043 = dma.done %s1039, 14336
        $region52: #{tpu_custom_call.1} parent=47 // pred_fallthru
          _
      $region48: #{tpu_custom_call.1} parent=5 // pred_fallthru
        _
    $region6: #{tpu_custom_call.1} parent=1 // loop_footer
      %s20 = sadd.s32 1, %s16
    $region7: #{tpu_custom_call.1} parent=1 // loop_footer_branch
      %15 = sbr.rel target = $region3
    $region8: #{tpu_custom_call.1} parent=1 // loop_exit
      _
    %1044 = vsyncpa [#allocation3], 1
    %s1045 = scalar_lea.sflag [#allocation3], 1
    %1046 = vsyncpa %s1045, 1
    %1047 = vsyncpa [#allocation6], 1
    %1048 = vsyncpa [#allocation4], 1
    %s1049 = scalar_lea.sflag [#allocation4], 1
    %1050 = vsyncpa %s1049, 1

// kernel: tpu_custom_call.1
$region0: #{tpu_custom_call.1}
  #allocation0 [shape = 'u32[]', space=smem, size = 0x4, offset = 0x4, fixed_abs, tag = 'smem constant byte address 0x4 - core index']
  #allocation1 [shape = 'u32[144,128]{1,0:T(1,128)}', space=vmem, size = 0x12000, scoped, tag = 'internal scratch']
  %s0 = inlined_call_operand.hbm [shape: f32[8,16,16], index: 0, kind: input, shape index: {}]
  %s1 = inlined_call_operand.vmem [shape: f32[224,16], index: 1, kind: input, shape index: {}]
  %s2 = inlined_call_operand.hbm [shape: f32[16,224], index: 2, kind: input, shape index: {}]
  %s3 = inlined_call_operand.hbm [shape: f32[8,224,224], index: 3, kind: output, shape index: {}]
  %s4 = sld [smem:[#allocation0]]
  $region53: #{tpu_custom_call.1} parent=0
    _
  %s6 = ssub.s32 1, %s4
  %s7 = scalar_select 0, %s6, %s4
  $region1: #{tpu_custom_call.1} parent=0
    #allocation2 [shape = 'u8[32768]{0}', space=vmem, size = 0x8000, scoped, tag = 'input window, operand 0']
    #allocation3 [shape = 's32[2]{0}', space=sflag, size = 0x8, scoped, tag = 'scoped memory for tpu_custom_call.1']
    #allocation4 [shape = 's32[2]{0}', space=sflag, size = 0x8, scoped, tag = 'scoped memory for tpu_custom_call.1']
    #allocation5 [shape = 'u8[16384]{0}', space=vmem, size = 0x4000, scoped, tag = 'input window, operand 2, single buffered']
    #allocation6 [shape = 's32[1]{0}', space=sflag, size = 0x4, scoped, tag = 'scoped memory for tpu_custom_call.1']
    #allocation7 [shape = 'u8[917504]{0}', space=vmem, size = 0xe0000, scoped, tag = 'output window, operand 0']
    %8 = vsyncpa [#allocation3], 0
    %s9 = scalar_lea.sflag [#allocation3], 1
    %10 = vsyncpa %s9, 0
    %11 = vsyncpa [#allocation6], 0
    %12 = vsyncpa [#allocation4], 0
    %s13 = scalar_lea.sflag [#allocation4], 1
    %14 = vsyncpa %s13, 0
    loop: start=0, step=1, limit=6
    $region2: #{tpu_custom_call.1} parent=1 // loop_pre_header
      _
    $region3: #{tpu_custom_call.1} parent=1 // loop_header
      %s16 = sphi 0, %s20
      %p17 = scmp.ge.s32.totalorder %s16, 6
      %s26 = sphi 0, %s28
      %s29 = sphi 0, %s26
      %s30 = sphi 0, %s29
      %s46 = sphi 0, %s30
      %s50 = sphi 0, %s50
      %s52 = sphi 0, %s50
      %s53 = sphi 0, %s52
      %s67 = sphi 0, %s53
      %s71 = sphi 0, %s71
      %s73 = sphi 0, %s71
      %s74 = sphi 0, %s73
      %s88 = sphi 0, %s74
      %s94 = sphi 0, %s96
      %s97 = sphi 0, %s94
      %s98 = sphi 0, %s97
      %s114 = sphi 0, %s98
    $region4: #{tpu_custom_call.1} parent=1 // loop_header_branch
      %19 = sbr.rel (%p17) target = $region8
    $region5: #{tpu_custom_call.1} parent=1 // loop_body
      %s21 = ssub.s32 %s16, 1
      %s22 = ssub.s32 %s16, 2
      %s23 = sadd.s32 %s16, 1
      %s24 = ssub.s32 %s16, %s23
      %p25 = scmp.eq.s32.totalorder %s24, 0
      %s27 = sadd.s32 %s26, 1
      %s28 = scalar_select %p25, %s26, %s27
      %p31 = pneg %p25
      %p32 = scmp.eq.s32.totalorder %s16, 3
      %p33 = por %p31, %p32
      %p34 = scmp.ne.s32.totalorder %s26, %s29
      %p35 = scmp.eq.s32.totalorder %s16, 0
      %p36 = por %p34, %p35
      %p37 = scmp.ne.s32.totalorder %s26, %s29
      %p38 = scmp.eq.s32.totalorder %s21, 3
      %p39 = por %p37, %p38
      %p40 = scmp.ne.s32.totalorder %s29, %s30
      %p41 = scmp.eq.s32.totalorder %s21, 0
      %p42 = por %p40, %p41
      %p43 = scmp.ne.s32.totalorder %s29, %s30
      %p44 = scmp.eq.s32.totalorder %s22, 3
      %p45 = por %p43, %p44
      %p47 = scmp.ne.s32.totalorder %s30, %s46
      %p48 = scmp.eq.s32.totalorder %s22, 0
      %p49 = por %p47, %p48
      %s51 = sadd.s32 %s50, 1
      %p54 = scmp.eq.s32.totalorder %s16, 3
      %p55 = scmp.ne.s32.totalorder %s50, %s52
      %p56 = scmp.eq.s32.totalorder %s16, 0
      %p57 = por %p55, %p56
      %p58 = scmp.ne.s32.totalorder %s50, %s52
      %p59 = scmp.eq.s32.totalorder %s21, 3
      %p60 = por %p58, %p59
      %p61 = scmp.ne.s32.totalorder %s52, %s53
      %p62 = scmp.eq.s32.totalorder %s21, 0
      %p63 = por %p61, %p62
      %p64 = scmp.ne.s32.totalorder %s52, %s53
      %p65 = scmp.eq.s32.totalorder %s22, 3
      %p66 = por %p64, %p65
      %p68 = scmp.ne.s32.totalorder %s53, %s67
      %p69 = scmp.eq.s32.totalorder %s22, 0
      %p70 = por %p68, %p69
      %s72 = sadd.s32 %s71, 1
      %p75 = scmp.eq.s32.totalorder %s16, 3
      %p76 = scmp.ne.s32.totalorder %s71, %s73
      %p77 = scmp.eq.s32.totalorder %s16, 0
      %p78 = por %p76, %p77
      %p79 = scmp.ne.s32.totalorder %s71, %s73
      %p80 = scmp.eq.s32.totalorder %s21, 3
      %p81 = por %p79, %p80
      %p82 = scmp.ne.s32.totalorder %s73, %s74
      %p83 = scmp.eq.s32.totalorder %s21, 0
      %p84 = por %p82, %p83
      %p85 = scmp.ne.s32.totalorder %s73, %s74
      %p86 = scmp.eq.s32.totalorder %s22, 3
      %p87 = por %p85, %p86
      %p89 = scmp.ne.s32.totalorder %s74, %s88
      %p90 = scmp.eq.s32.totalorder %s22, 0
      %p91 = por %p89, %p90
      %s92 = ssub.s32 %s16, %s23
      %p93 = scmp.eq.s32.totalorder %s92, 0
      %s95 = sadd.s32 %s94, 1
      %s96 = scalar_select %p93, %s94, %s95
      %p99 = pneg %p93
      %p100 = scmp.eq.s32.totalorder %s16, 3
      %p101 = por %p99, %p100
      %p102 = scmp.ne.s32.totalorder %s94, %s97
      %p103 = scmp.eq.s32.totalorder %s16, 0
      %p104 = por %p102, %p103
      %p105 = scmp.ne.s32.totalorder %s94, %s97
      %p106 = scmp.eq.s32.totalorder %s21, 3
      %p107 = por %p105, %p106
      %p108 = scmp.ne.s32.totalorder %s97, %s98
      %p109 = scmp.eq.s32.totalorder %s21, 0
      %p110 = por %p108, %p109
      %p111 = scmp.ne.s32.totalorder %s97, %s98
      %p112 = scmp.eq.s32.totalorder %s22, 3
      %p113 = por %p111, %p112
      %p115 = scmp.ne.s32.totalorder %s98, %s114
      %p116 = scmp.eq.s32.totalorder %s22, 0
      %p117 = por %p115, %p116
      %p118 = scmp.le.s32.totalorder 1, %s16
      %p119 = scmp.lt.s32.totalorder %s16, 5
      %p120 = pnand %p118, %p119
      %p121 = pneg %p120
      // Predicated region
      $region9: #{tpu_custom_call.1} parent=5 // pred_check
        _
      $region10: #{tpu_custom_call.1} parent=5 // pred_check_branch
        %123 = sbr.rel (%p120) target = $region12
      $region11: #{tpu_custom_call.1} parent=5 // pred_region
        %s124 = ssub.s32 %s16, 1
        // Predicated region
        $region13: #{tpu_custom_call.1} parent=11 // pred_check
          %p125 = pneg %p63
        $region14: #{tpu_custom_call.1} parent=11 // pred_check_branch
          %127 = sbr.rel (%p125) target = $region16
        $region15: #{tpu_custom_call.1} parent=11 // pred_region
          _
        $region16: #{tpu_custom_call.1} parent=11 // pred_fallthru
          _
        // Predicated region
        $region17: #{tpu_custom_call.1} parent=11 // pred_check
          %p128 = pneg %p84
        $region18: #{tpu_custom_call.1} parent=11 // pred_check_branch
          %130 = sbr.rel (%p128) target = $region20
        $region19: #{tpu_custom_call.1} parent=11 // pred_region
          %s132 = ssub.s32 512, 512
          %133 = vsyncadd [#allocation6], %s132
          %s134 = sshll.u32 [#allocation5], 4
          %s135 = int_to_ptr.vmem [resolvable:$true] %s134
          %140 = dma.hbm_to_vmem [thread:$0]  %s2, 512, %s135, [#allocation6], 256, 256, 16
        $region20: #{tpu_custom_call.1} parent=11 // pred_fallthru
          _
      $region12: #{tpu_custom_call.1} parent=5 // pred_fallthru
        _
      %p141 = scmp.lt.s32.totalorder %s16, 4
      // Predicated region
      $region21: #{tpu_custom_call.1} parent=5 // pred_check
        %p142 = pneg %p141
      $region22: #{tpu_custom_call.1} parent=5 // pred_check_branch
        %144 = sbr.rel (%p142) target = $region24
      $region23: #{tpu_custom_call.1} parent=5 // pred_region
        // Predicated region
        $region25: #{tpu_custom_call.1} parent=23 // pred_check
          %p145 = pneg %p36
        $region26: #{tpu_custom_call.1} parent=23 // pred_check_branch
          %147 = sbr.rel (%p145) target = $region28
        $region27: #{tpu_custom_call.1} parent=23 // pred_region
          %s148 = sand.u32 %s26, 1
          %s149 = scalar_lea.sflag [#allocation3], %s148
          %s150 = sand.u32 %s26, 1
          %s151 = smul.addr %s150, 32
          %s152 = scalar_lea.vmem [#allocation2], %s151
          %s153 = smul.u32 2, %s16
          %s155 = ssub.s32 512, 512
          %156 = vsyncadd %s149, %s155
          %s157 = smul.addr %s153, 2
          %s158 = smul.addr %s157, 128
          %s159 = scalar_lea.hbm %s0, %s158
          %s160 = sshll.u32 %s152, 4
          %s161 = int_to_ptr.vmem [resolvable:$true] %s160
          %166 = dma.hbm_to_vmem [thread:$0]  %s159, 512, %s161, %s149, 128, 128, 8
        $region28: #{tpu_custom_call.1} parent=23 // pred_fallthru
          _
      $region24: #{tpu_custom_call.1} parent=5 // pred_fallthru
        _
      %p167 = scmp.le.s32.totalorder 1, %s16
      %p168 = scmp.lt.s32.totalorder %s16, 5
      %p169 = pnand %p167, %p168
      %p170 = pneg %p169
      // Predicated region
      $region29: #{tpu_custom_call.1} parent=5 // pred_check
        _
      $region30: #{tpu_custom_call.1} parent=5 // pred_check_branch
        %172 = sbr.rel (%p169) target = $region32
      $region31: #{tpu_custom_call.1} parent=5 // pred_region
        %s173 = ssub.s32 %s16, 1
        %s174 = sand.u32 %s29, 1
        %s175 = scalar_lea.sflag [#allocation3], %s174
        %s176 = sand.u32 %s29, 1
        %s177 = smul.addr %s176, 32
        %s178 = scalar_lea.vmem [#allocation2], %s177
        // Predicated region
        $region33: #{tpu_custom_call.1} parent=31 // pred_check
          %p179 = pneg %p42
        $region34: #{tpu_custom_call.1} parent=31 // pred_check_branch
          %181 = sbr.rel (%p179) target = $region36
        $region35: #{tpu_custom_call.1} parent=31 // pred_region
          %182 = dma.done %s175, 512
        $region36: #{tpu_custom_call.1} parent=31 // pred_fallthru
          _
        // Predicated region
        $region37: #{tpu_custom_call.1} parent=31 // pred_check
          %p183 = pneg %p84
        $region38: #{tpu_custom_call.1} parent=31 // pred_check_branch
          %185 = sbr.rel (%p183) target = $region40
        $region39: #{tpu_custom_call.1} parent=31 // pred_region
          %186 = dma.done [#allocation6], 512
        $region40: #{tpu_custom_call.1} parent=31 // pred_fallthru
          _
        %s187 = sand.u32 %s29, 1
        %s188 = scalar_lea.sflag [#allocation3], %s187
        %s189 = sand.u32 %s29, 1
        %s190 = smul.addr %s189, 32
        %s191 = scalar_lea.vmem [#allocation2], %s190
        %p192 = pneg %p42
        %p193 = pneg %p39
        %p194 = pneg %p63
        %p195 = pneg %p60
        %p196 = pneg %p84
        %p197 = pneg %p81
        %p198 = pneg %p110
        %p199 = pneg %p107
        %s200 = sand.u32 %s97, 1
        %s201 = scalar_lea.sflag [#allocation4], %s200
        %s202 = sand.u32 %s97, 1
        %s203 = smul.addr %s202, 896
        %s204 = scalar_lea.vmem [#allocation7], %s203
        %s205 = smul.u32 2, %s21
        %s206 = smul.u32 2, %s21
        %v207 = vld [vmem:[%s178] sm:$0xff]
        %v208 = vld [vmem:[%s178 + $0x8] sm:$0xff]
        %v209 = vld [vmem:[%s178 + $0x10] sm:$0xff]
        %v210 = vld [vmem:[%s178 + $0x18] sm:$0xff]
        %v211 = vld [vmem:[#allocation5] sm:$0xff]
        %v212 = vld [vmem:[#allocation5 + $0x8] sm:$0xff]
        %v213 = vld [vmem:[#allocation5 + $0x10] sm:$0xff]
        %v214 = vld [vmem:[#allocation5 + $0x18] sm:$0xff]
        %vm215 = vcmask 130048
        %v217 = vsel %vm215, %v207, 0
        %v220 = vsel %vm215, %v208, 0
        %v223 = vsel %vm215, %v209, 0
        %v226 = vsel %vm215, %v210, 0
        %228 = vmatprep.subr.mxu0 0.0
        %229 = vmatpush1.msra.mxu0 0.0
        %230 = vmatprep.subr.mxu0 0.0
        %231 = vmatpush1.msra.mxu0 0.0
        %232 = vmatprep.subr.mxu0 0.0
        %233 = vmatpush1.msra.mxu0 0.0
        %234 = vmatprep.subr.mxu0 0.0
        %235 = vmatpush1.msra.mxu0 0.0
        %236 = vmatprep.subr.mxu0 0.0
        %237 = vmatpush1.msra.mxu0 0.0
        %238 = vmatprep.subr.mxu0 0.0
        %239 = vmatpush1.msra.mxu0 0.0
        %240 = vmatprep.subr.mxu0 0.0
        %241 = vmatpush1.msra.mxu0 0.0
        %242 = vmatprep.subr.mxu0 0.0
        %243 = vmatpush1.msra.mxu0 0.0
        %244 = vmatprep.subr.mxu0 0.0
        %245 = vmatpush1.msra.mxu0 0.0
        %246 = vmatprep.subr.mxu0 0.0
        %247 = vmatpush1.msra.mxu0 0.0
        %248 = vmatprep.subr.mxu0 0.0
        %249 = vmatpush1.msra.mxu0 0.0
        %250 = vmatprep.subr.mxu0 0.0
        %251 = vmatpush1.msra.mxu0 0.0
        %252 = vmatprep.subr.mxu0 0.0
        %253 = vmatpush1.msra.mxu0 0.0
        %254 = vmatprep.subr.mxu0 0.0
        %255 = vmatpush1.msra.mxu0 0.0
        %256 = vmatprep.subr.mxu0 %v214
        %257 = vmatpush1.msra.mxu0 %v213
        %258 = vmatprep.subr.mxu0 %v212
        %259 = vmatpush1.msra.mxu0 %v211
        %260 = vmatprep.subr.mxu0 0.0
        %261 = vmatpush2.msra.mxu0 0.0
        %262 = vmatprep.subr.mxu0 0.0
        %263 = vmatpush2.msra.mxu0 0.0
        %264 = vmatprep.subr.mxu0 0.0
        %265 = vmatpush2.msra.mxu0 0.0
        %266 = vmatprep.subr.mxu0 0.0
        %267 = vmatpush2.msra.mxu0 0.0
        %268 = vmatprep.subr.mxu0 0.0
        %269 = vmatpush2.msra.mxu0 0.0
        %270 = vmatprep.subr.mxu0 0.0
        %271 = vmatpush2.msra.mxu0 0.0
        %272 = vmatprep.subr.mxu0 0.0
        %273 = vmatpush2.msra.mxu0 0.0
        %274 = vmatprep.subr.mxu0 0.0
        %275 = vmatpush2.msra.mxu0 0.0
        %276 = vmatprep.subr.mxu0 0.0
        %277 = vmatpush2.msra.mxu0 0.0
        %278 = vmatprep.subr.mxu0 0.0
        %279 = vmatpush2.msra.mxu0 0.0
        %280 = vmatprep.subr.mxu0 0.0
        %281 = vmatpush2.msra.mxu0 0.0
        %282 = vmatprep.subr.mxu0 0.0
        %283 = vmatpush2.msra.mxu0 0.0
        %284 = vmatprep.subr.mxu0 0.0
        %285 = vmatpush2.msra.mxu0 0.0
        %286 = vmatprep.subr.mxu0 0.0
        %287 = vmatpush2.msra.mxu0 0.0
        %288 = vmatprep.subr.mxu0 0.0
        %289 = vmatpush2.msra.mxu0 0.0
        %290 = vmatprep.subr.mxu0 0.0
        %291 = vmatpush2.msra.mxu0 0.0
        %292 = vmatprep.mubr.f32.mxu0 0.0
        %293 = vmatmul.mubr.f32.gmra.mxu0 %v217
        %v294 = vpop.f32.mrf.mxu0
        %v295 = vadd.f32 0.0, %v294
        %v296 = vpop.f32.mrf.mxu0
        %v297 = vadd.f32 0.0, %v296
        %298 = vmatprep.mubr.f32.mxu0 0.0
        %299 = vmatmul.mubr.f32.gmra.mxu0 %v220
        %v300 = vpop.f32.mrf.mxu0
        %v301 = vadd.f32 0.0, %v300
        %v302 = vpop.f32.mrf.mxu0
        %v303 = vadd.f32 0.0, %v302
        %304 = vmatprep.mubr.f32.mxu0 0.0
        %305 = vmatmul.mubr.f32.gmra.mxu0 %v223
        %v306 = vpop.f32.mrf.mxu0
        %v307 = vadd.f32 0.0, %v306
        %v308 = vpop.f32.mrf.mxu0
        %v309 = vadd.f32 0.0, %v308
        %310 = vmatprep.mubr.f32.mxu0 0.0
        %311 = vmatmul.mubr.f32.gmra.mxu0 %v226
        %v312 = vpop.f32.mrf.mxu0
        %v313 = vadd.f32 0.0, %v312
        %v314 = vpop.f32.mrf.mxu0
        %v315 = vadd.f32 0.0, %v314
        %316 = vdwg.mxu0
        %v317 = vld [vmem:[%s1] sm:$0xff]
        %v318 = vld [vmem:[%s1 + $0x8] sm:$0xff]
        %v319 = vld [vmem:[%s1 + $0x10] sm:$0xff]
        %v320 = vld [vmem:[%s1 + $0x18] sm:$0xff]
        %v321 = vld [vmem:[%s1 + $0x20] sm:$0xff]
        %v322 = vld [vmem:[%s1 + $0x28] sm:$0xff]
        %v323 = vld [vmem:[%s1 + $0x30] sm:$0xff]
        %v324 = vld [vmem:[%s1 + $0x38] sm:$0xff]
        %v325 = vld [vmem:[%s1 + $0x40] sm:$0xff]
        %v326 = vld [vmem:[%s1 + $0x48] sm:$0xff]
        %v327 = vld [vmem:[%s1 + $0x50] sm:$0xff]
        %v328 = vld [vmem:[%s1 + $0x58] sm:$0xff]
        %v329 = vld [vmem:[%s1 + $0x60] sm:$0xff]
        %v330 = vld [vmem:[%s1 + $0x68] sm:$0xff]
        %v331 = vld [vmem:[%s1 + $0x70] sm:$0xff]
        %v332 = vld [vmem:[%s1 + $0x78] sm:$0xff]
        %v333 = vld [vmem:[%s1 + $0x80] sm:$0xff]
        %v334 = vld [vmem:[%s1 + $0x88] sm:$0xff]
        %v335 = vld [vmem:[%s1 + $0x90] sm:$0xff]
        %v336 = vld [vmem:[%s1 + $0x98] sm:$0xff]
        %v337 = vld [vmem:[%s1 + $0xa0] sm:$0xff]
        %v338 = vld [vmem:[%s1 + $0xa8] sm:$0xff]
        %v339 = vld [vmem:[%s1 + $0xb0] sm:$0xff]
        %v340 = vld [vmem:[%s1 + $0xb8] sm:$0xff]
        %v341 = vld [vmem:[%s1 + $0xc0] sm:$0xff]
        %v342 = vld [vmem:[%s1 + $0xc8] sm:$0xff]
        %v343 = vld [vmem:[%s1 + $0xd0] sm:$0xff]
        %v344 = vld [vmem:[%s1 + $0xd8] sm:$0xff]
        %v346 = vsel %vm215, %v317, 0
        %v349 = vsel %vm215, %v318, 0
        %v352 = vsel %vm215, %v319, 0
        %v355 = vsel %vm215, %v320, 0
        %v358 = vsel %vm215, %v321, 0
        %v361 = vsel %vm215, %v322, 0
        %v364 = vsel %vm215, %v323, 0
        %v367 = vsel %vm215, %v324, 0
        %v370 = vsel %vm215, %v325, 0
        %v373 = vsel %vm215, %v326, 0
        %v376 = vsel %vm215, %v327, 0
        %v379 = vsel %vm215, %v328, 0
        %v382 = vsel %vm215, %v329, 0
        %v385 = vsel %vm215, %v330, 0
        %v388 = vsel %vm215, %v331, 0
        %v391 = vsel %vm215, %v332, 0
        %v394 = vsel %vm215, %v333, 0
        %v397 = vsel %vm215, %v334, 0
        %v400 = vsel %vm215, %v335, 0
        %v403 = vsel %vm215, %v336, 0
        %v406 = vsel %vm215, %v337, 0
        %v409 = vsel %vm215, %v338, 0
        %v412 = vsel %vm215, %v339, 0
        %v415 = vsel %vm215, %v340, 0
        %v418 = vsel %vm215, %v341, 0
        %v421 = vsel %vm215, %v342, 0
        %v424 = vsel %vm215, %v343, 0
        %v427 = vsel %vm215, %v344, 0
        %429 = vmatprep.subr.mxu0 0.0
        %430 = vmatpush1.msra.mxu0 0.0
        %431 = vmatprep.subr.mxu0 0.0
        %432 = vmatpush1.msra.mxu0 0.0
        %433 = vmatprep.subr.mxu0 0.0
        %434 = vmatpush1.msra.mxu0 0.0
        %435 = vmatprep.subr.mxu0 0.0
        %436 = vmatpush1.msra.mxu0 0.0
        %437 = vmatprep.subr.mxu0 0.0
        %438 = vmatpush1.msra.mxu0 0.0
        %439 = vmatprep.subr.mxu0 0.0
        %440 = vmatpush1.msra.mxu0 0.0
        %441 = vmatprep.subr.mxu0 0.0
        %442 = vmatpush1.msra.mxu0 0.0
        %443 = vmatprep.subr.mxu0 0.0
        %444 = vmatpush1.msra.mxu0 0.0
        %445 = vmatprep.subr.mxu0 0.0
        %446 = vmatpush1.msra.mxu0 0.0
        %447 = vmatprep.subr.mxu0 0.0
        %448 = vmatpush1.msra.mxu0 0.0
        %449 = vmatprep.subr.mxu0 0.0
        %450 = vmatpush1.msra.mxu0 0.0
        %451 = vmatprep.subr.mxu0 0.0
        %452 = vmatpush1.msra.mxu0 0.0
        %453 = vmatprep.subr.mxu0 0.0
        %454 = vmatpush1.msra.mxu0 0.0
        %455 = vmatprep.subr.mxu0 0.0
        %456 = vmatpush1.msra.mxu0 0.0
        %457 = vmatprep.subr.mxu0 %v303
        %458 = vmatpush1.msra.mxu0 %v301
        %459 = vmatprep.subr.mxu0 %v297
        %460 = vmatpush1.msra.mxu0 %v295
        %461 = vmatprep.subr.mxu0 0.0
        %462 = vmatpush2.msra.mxu0 0.0
        %463 = vmatprep.subr.mxu0 0.0
        %464 = vmatpush2.msra.mxu0 0.0
        %465 = vmatprep.subr.mxu0 0.0
        %466 = vmatpush2.msra.mxu0 0.0
        %467 = vmatprep.subr.mxu0 0.0
        %468 = vmatpush2.msra.mxu0 0.0
        %469 = vmatprep.subr.mxu0 0.0
        %470 = vmatpush2.msra.mxu0 0.0
        %471 = vmatprep.subr.mxu0 0.0
        %472 = vmatpush2.msra.mxu0 0.0
        %473 = vmatprep.subr.mxu0 0.0
        %474 = vmatpush2.msra.mxu0 0.0
        %475 = vmatprep.subr.mxu0 0.0
        %476 = vmatpush2.msra.mxu0 0.0
        %477 = vmatprep.subr.mxu0 0.0
        %478 = vmatpush2.msra.mxu0 0.0
        %479 = vmatprep.subr.mxu0 0.0
        %480 = vmatpush2.msra.mxu0 0.0
        %481 = vmatprep.subr.mxu0 0.0
        %482 = vmatpush2.msra.mxu0 0.0
        %483 = vmatprep.subr.mxu0 0.0
        %484 = vmatpush2.msra.mxu0 0.0
        %485 = vmatprep.subr.mxu0 0.0
        %486 = vmatpush2.msra.mxu0 0.0
        %487 = vmatprep.subr.mxu0 0.0
        %488 = vmatpush2.msra.mxu0 0.0
        %489 = vmatprep.subr.mxu0 0.0
        %490 = vmatpush2.msra.mxu0 0.0
        %491 = vmatprep.subr.mxu0 0.0
        %492 = vmatpush2.msra.mxu0 0.0
        %493 = vmatprep.mubr.f32.mxu0 0.0
        %494 = vmatmul.mubr.f32.gmra.mxu0 %v346
        %v495 = vpop.f32.mrf.mxu0
        %v496 = vadd.f32 0.0, %v495
        %v497 = vpop.f32.mrf.mxu0
        %v498 = vadd.f32 0.0, %v497
        %499 = vmatprep.mubr.f32.mxu0 0.0
        %500 = vmatmul.mubr.f32.gmra.mxu0 %v349
        %v501 = vpop.f32.mrf.mxu0
        %v502 = vadd.f32 0.0, %v501
        %v503 = vpop.f32.mrf.mxu0
        %v504 = vadd.f32 0.0, %v503
        %505 = vmatprep.mubr.f32.mxu0 0.0
        %506 = vmatmul.mubr.f32.gmra.mxu0 %v352
        %v507 = vpop.f32.mrf.mxu0
        %v508 = vadd.f32 0.0, %v507
        %v509 = vpop.f32.mrf.mxu0
        %v510 = vadd.f32 0.0, %v509
        %511 = vmatprep.mubr.f32.mxu0 0.0
        %512 = vmatmul.mubr.f32.gmra.mxu0 %v355
        %v513 = vpop.f32.mrf.mxu0
        %v514 = vadd.f32 0.0, %v513
        %v515 = vpop.f32.mrf.mxu0
        %v516 = vadd.f32 0.0, %v515
        %517 = vmatprep.mubr.f32.mxu0 0.0
        %518 = vmatmul.mubr.f32.gmra.mxu0 %v358
        %v519 = vpop.f32.mrf.mxu0
        %v520 = vadd.f32 0.0, %v519
        %v521 = vpop.f32.mrf.mxu0
        %v522 = vadd.f32 0.0, %v521
        %523 = vmatprep.mubr.f32.mxu0 0.0
        %524 = vmatmul.mubr.f32.gmra.mxu0 %v361
        %v525 = vpop.f32.mrf.mxu0
        %v526 = vadd.f32 0.0, %v525
        %v527 = vpop.f32.mrf.mxu0
        %v528 = vadd.f32 0.0, %v527
        %529 = vmatprep.mubr.f32.mxu0 0.0
        %530 = vmatmul.mubr.f32.gmra.mxu0 %v364
        %v531 = vpop.f32.mrf.mxu0
        %v532 = vadd.f32 0.0, %v531
        %v533 = vpop.f32.mrf.mxu0
        %v534 = vadd.f32 0.0, %v533
        %535 = vmatprep.mubr.f32.mxu0 0.0
        %536 = vmatmul.mubr.f32.gmra.mxu0 %v367
        %v537 = vpop.f32.mrf.mxu0
        %v538 = vadd.f32 0.0, %v537
        %v539 = vpop.f32.mrf.mxu0
        %v540 = vadd.f32 0.0, %v539
        %541 = vmatprep.mubr.f32.mxu0 0.0
        %542 = vmatmul.mubr.f32.gmra.mxu0 %v370
        %v543 = vpop.f32.mrf.mxu0
        %v544 = vadd.f32 0.0, %v543
        %v545 = vpop.f32.mrf.mxu0
        %v546 = vadd.f32 0.0, %v545
        %547 = vmatprep.mubr.f32.mxu0 0.0
        %548 = vmatmul.mubr.f32.gmra.mxu0 %v373
        %v549 = vpop.f32.mrf.mxu0
        %v550 = vadd.f32 0.0, %v549
        %v551 = vpop.f32.mrf.mxu0
        %v552 = vadd.f32 0.0, %v551
        %553 = vmatprep.mubr.f32.mxu0 0.0
        %554 = vmatmul.mubr.f32.gmra.mxu0 %v376
        %v555 = vpop.f32.mrf.mxu0
        %v556 = vadd.f32 0.0, %v555
        %v557 = vpop.f32.mrf.mxu0
        %v558 = vadd.f32 0.0, %v557
        %559 = vmatprep.mubr.f32.mxu0 0.0
        %560 = vmatmul.mubr.f32.gmra.mxu0 %v379
        %v561 = vpop.f32.mrf.mxu0
        %v562 = vadd.f32 0.0, %v561
        %v563 = vpop.f32.mrf.mxu0
        %v564 = vadd.f32 0.0, %v563
        %565 = vmatprep.mubr.f32.mxu0 0.0
        %566 = vmatmul.mubr.f32.gmra.mxu0 %v382
        %v567 = vpop.f32.mrf.mxu0
        %v568 = vadd.f32 0.0, %v567
        %v569 = vpop.f32.mrf.mxu0
        %v570 = vadd.f32 0.0, %v569
        %571 = vmatprep.mubr.f32.mxu0 0.0
        %572 = vmatmul.mubr.f32.gmra.mxu0 %v385
        %v573 = vpop.f32.mrf.mxu0
        %v574 = vadd.f32 0.0, %v573
        %v575 = vpop.f32.mrf.mxu0
        %v576 = vadd.f32 0.0, %v575
        %577 = vmatprep.mubr.f32.mxu0 0.0
        %578 = vmatmul.mubr.f32.gmra.mxu0 %v388
        %v579 = vpop.f32.mrf.mxu0
        %v580 = vadd.f32 0.0, %v579
        %v581 = vpop.f32.mrf.mxu0
        %v582 = vadd.f32 0.0, %v581
        %583 = vmatprep.mubr.f32.mxu0 0.0
        %584 = vmatmul.mubr.f32.gmra.mxu0 %v391
        %v585 = vpop.f32.mrf.mxu0
        %v586 = vadd.f32 0.0, %v585
        %v587 = vpop.f32.mrf.mxu0
        %v588 = vadd.f32 0.0, %v587
        %589 = vmatprep.mubr.f32.mxu0 0.0
        %590 = vmatmul.mubr.f32.gmra.mxu0 %v394
        %v591 = vpop.f32.mrf.mxu0
        %v592 = vadd.f32 0.0, %v591
        %v593 = vpop.f32.mrf.mxu0
        %v594 = vadd.f32 0.0, %v593
        %595 = vmatprep.mubr.f32.mxu0 0.0
        %596 = vmatmul.mubr.f32.gmra.mxu0 %v397
        %v597 = vpop.f32.mrf.mxu0
        %v598 = vadd.f32 0.0, %v597
        %v599 = vpop.f32.mrf.mxu0
        %v600 = vadd.f32 0.0, %v599
        %601 = vmatprep.mubr.f32.mxu0 0.0
        %602 = vmatmul.mubr.f32.gmra.mxu0 %v400
        %v603 = vpop.f32.mrf.mxu0
        %v604 = vadd.f32 0.0, %v603
        %v605 = vpop.f32.mrf.mxu0
        %v606 = vadd.f32 0.0, %v605
        %607 = vmatprep.mubr.f32.mxu0 0.0
        %608 = vmatmul.mubr.f32.gmra.mxu0 %v403
        %v609 = vpop.f32.mrf.mxu0
        %v610 = vadd.f32 0.0, %v609
        %v611 = vpop.f32.mrf.mxu0
        %v612 = vadd.f32 0.0, %v611
        %613 = vmatprep.mubr.f32.mxu0 0.0
        %614 = vmatmul.mubr.f32.gmra.mxu0 %v406
        %v615 = vpop.f32.mrf.mxu0
        %v616 = vadd.f32 0.0, %v615
        %v617 = vpop.f32.mrf.mxu0
        %v618 = vadd.f32 0.0, %v617
        %619 = vmatprep.mubr.f32.mxu0 0.0
        %620 = vmatmul.mubr.f32.gmra.mxu0 %v409
        %v621 = vpop.f32.mrf.mxu0
        %v622 = vadd.f32 0.0, %v621
        %v623 = vpop.f32.mrf.mxu0
        %v624 = vadd.f32 0.0, %v623
        %625 = vmatprep.mubr.f32.mxu0 0.0
        %626 = vmatmul.mubr.f32.gmra.mxu0 %v412
        %v627 = vpop.f32.mrf.mxu0
        %v628 = vadd.f32 0.0, %v627
        %v629 = vpop.f32.mrf.mxu0
        %v630 = vadd.f32 0.0, %v629
        %631 = vmatprep.mubr.f32.mxu0 0.0
        %632 = vmatmul.mubr.f32.gmra.mxu0 %v415
        %v633 = vpop.f32.mrf.mxu0
        %v634 = vadd.f32 0.0, %v633
        %v635 = vpop.f32.mrf.mxu0
        %v636 = vadd.f32 0.0, %v635
        %637 = vmatprep.mubr.f32.mxu0 0.0
        %638 = vmatmul.mubr.f32.gmra.mxu0 %v418
        %v639 = vpop.f32.mrf.mxu0
        %v640 = vadd.f32 0.0, %v639
        %v641 = vpop.f32.mrf.mxu0
        %v642 = vadd.f32 0.0, %v641
        %643 = vmatprep.mubr.f32.mxu0 0.0
        %644 = vmatmul.mubr.f32.gmra.mxu0 %v421
        %v645 = vpop.f32.mrf.mxu0
        %v646 = vadd.f32 0.0, %v645
        %v647 = vpop.f32.mrf.mxu0
        %v648 = vadd.f32 0.0, %v647
        %649 = vmatprep.mubr.f32.mxu0 0.0
        %650 = vmatmul.mubr.f32.gmra.mxu0 %v424
        %v651 = vpop.f32.mrf.mxu0
        %v652 = vadd.f32 0.0, %v651
        %v653 = vpop.f32.mrf.mxu0
        %v654 = vadd.f32 0.0, %v653
        %655 = vmatprep.mubr.f32.mxu0 0.0
        %656 = vmatmul.mubr.f32.gmra.mxu0 %v427
        %v657 = vpop.f32.mrf.mxu0
        %v658 = vadd.f32 0.0, %v657
        %v659 = vpop.f32.mrf.mxu0
        %v660 = vadd.f32 0.0, %v659
        %661 = vdwg.mxu0
        %662 = vmatprep.subr.mxu0 0.0
        %663 = vmatpush1.msra.mxu0 0.0
        %664 = vmatprep.subr.mxu0 0.0
        %665 = vmatpush1.msra.mxu0 0.0
        %666 = vmatprep.subr.mxu0 0.0
        %667 = vmatpush1.msra.mxu0 0.0
        %668 = vmatprep.subr.mxu0 0.0
        %669 = vmatpush1.msra.mxu0 0.0
        %670 = vmatprep.subr.mxu0 0.0
        %671 = vmatpush1.msra.mxu0 0.0
        %672 = vmatprep.subr.mxu0 0.0
        %673 = vmatpush1.msra.mxu0 0.0
        %674 = vmatprep.subr.mxu0 0.0
        %675 = vmatpush1.msra.mxu0 0.0
        %676 = vmatprep.subr.mxu0 0.0
        %677 = vmatpush1.msra.mxu0 0.0
        %678 = vmatprep.subr.mxu0 0.0
        %679 = vmatpush1.msra.mxu0 0.0
        %680 = vmatprep.subr.mxu0 0.0
        %681 = vmatpush1.msra.mxu0 0.0
        %682 = vmatprep.subr.mxu0 0.0
        %683 = vmatpush1.msra.mxu0 0.0
        %684 = vmatprep.subr.mxu0 0.0
        %685 = vmatpush1.msra.mxu0 0.0
        %686 = vmatprep.subr.mxu0 0.0
        %687 = vmatpush1.msra.mxu0 0.0
        %688 = vmatprep.subr.mxu0 0.0
        %689 = vmatpush1.msra.mxu0 0.0
        %690 = vmatprep.subr.mxu0 %v315
        %691 = vmatpush1.msra.mxu0 %v313
        %692 = vmatprep.subr.mxu0 %v309
        %693 = vmatpush1.msra.mxu0 %v307
        %694 = vmatprep.subr.mxu0 0.0
        %695 = vmatpush2.msra.mxu0 0.0
        %696 = vmatprep.subr.mxu0 0.0
        %697 = vmatpush2.msra.mxu0 0.0
        %698 = vmatprep.subr.mxu0 0.0
        %699 = vmatpush2.msra.mxu0 0.0
        %700 = vmatprep.subr.mxu0 0.0
        %701 = vmatpush2.msra.mxu0 0.0
        %702 = vmatprep.subr.mxu0 0.0
        %703 = vmatpush2.msra.mxu0 0.0
        %704 = vmatprep.subr.mxu0 0.0
        %705 = vmatpush2.msra.mxu0 0.0
        %706 = vmatprep.subr.mxu0 0.0
        %707 = vmatpush2.msra.mxu0 0.0
        %708 = vmatprep.subr.mxu0 0.0
        %709 = vmatpush2.msra.mxu0 0.0
        %710 = vmatprep.subr.mxu0 0.0
        %711 = vmatpush2.msra.mxu0 0.0
        %712 = vmatprep.subr.mxu0 0.0
        %713 = vmatpush2.msra.mxu0 0.0
        %714 = vmatprep.subr.mxu0 0.0
        %715 = vmatpush2.msra.mxu0 0.0
        %716 = vmatprep.subr.mxu0 0.0
        %717 = vmatpush2.msra.mxu0 0.0
        %718 = vmatprep.subr.mxu0 0.0
        %719 = vmatpush2.msra.mxu0 0.0
        %720 = vmatprep.subr.mxu0 0.0
        %721 = vmatpush2.msra.mxu0 0.0
        %722 = vmatprep.subr.mxu0 0.0
        %723 = vmatpush2.msra.mxu0 0.0
        %724 = vmatprep.subr.mxu0 0.0
        %725 = vmatpush2.msra.mxu0 0.0
        %726 = vmatprep.mubr.f32.mxu0 0.0
        %727 = vmatmul.mubr.f32.gmra.mxu0 %v346
        %v728 = vpop.f32.mrf.mxu0
        %v729 = vadd.f32 0.0, %v728
        %v730 = vpop.f32.mrf.mxu0
        %v731 = vadd.f32 0.0, %v730
        %732 = vmatprep.mubr.f32.mxu0 0.0
        %733 = vmatmul.mubr.f32.gmra.mxu0 %v349
        %v734 = vpop.f32.mrf.mxu0
        %v735 = vadd.f32 0.0, %v734
        %v736 = vpop.f32.mrf.mxu0
        %v737 = vadd.f32 0.0, %v736
        %738 = vmatprep.mubr.f32.mxu0 0.0
        %739 = vmatmul.mubr.f32.gmra.mxu0 %v352
        %v740 = vpop.f32.mrf.mxu0
        %v741 = vadd.f32 0.0, %v740
        %v742 = vpop.f32.mrf.mxu0
        %v743 = vadd.f32 0.0, %v742
        %744 = vmatprep.mubr.f32.mxu0 0.0
        %745 = vmatmul.mubr.f32.gmra.mxu0 %v355
        %v746 = vpop.f32.mrf.mxu0
        %v747 = vadd.f32 0.0, %v746
        %v748 = vpop.f32.mrf.mxu0
        %v749 = vadd.f32 0.0, %v748
        %750 = vmatprep.mubr.f32.mxu0 0.0
        %751 = vmatmul.mubr.f32.gmra.mxu0 %v358
        %v752 = vpop.f32.mrf.mxu0
        %v753 = vadd.f32 0.0, %v752
        %v754 = vpop.f32.mrf.mxu0
        %v755 = vadd.f32 0.0, %v754
        %756 = vmatprep.mubr.f32.mxu0 0.0
        %757 = vmatmul.mubr.f32.gmra.mxu0 %v361
        %v758 = vpop.f32.mrf.mxu0
        %v759 = vadd.f32 0.0, %v758
        %v760 = vpop.f32.mrf.mxu0
        %v761 = vadd.f32 0.0, %v760
        %762 = vmatprep.mubr.f32.mxu0 0.0
        %763 = vmatmul.mubr.f32.gmra.mxu0 %v364
        %v764 = vpop.f32.mrf.mxu0
        %v765 = vadd.f32 0.0, %v764
        %v766 = vpop.f32.mrf.mxu0
        %v767 = vadd.f32 0.0, %v766
        %768 = vmatprep.mubr.f32.mxu0 0.0
        %769 = vmatmul.mubr.f32.gmra.mxu0 %v367
        %v770 = vpop.f32.mrf.mxu0
        %v771 = vadd.f32 0.0, %v770
        %v772 = vpop.f32.mrf.mxu0
        %v773 = vadd.f32 0.0, %v772
        %774 = vmatprep.mubr.f32.mxu0 0.0
        %775 = vmatmul.mubr.f32.gmra.mxu0 %v370
        %v776 = vpop.f32.mrf.mxu0
        %v777 = vadd.f32 0.0, %v776
        %v778 = vpop.f32.mrf.mxu0
        %v779 = vadd.f32 0.0, %v778
        %780 = vmatprep.mubr.f32.mxu0 0.0
        %781 = vmatmul.mubr.f32.gmra.mxu0 %v373
        %v782 = vpop.f32.mrf.mxu0
        %v783 = vadd.f32 0.0, %v782
        %v784 = vpop.f32.mrf.mxu0
        %v785 = vadd.f32 0.0, %v784
        %786 = vmatprep.mubr.f32.mxu0 0.0
        %787 = vmatmul.mubr.f32.gmra.mxu0 %v376
        %v788 = vpop.f32.mrf.mxu0
        %v789 = vadd.f32 0.0, %v788
        %v790 = vpop.f32.mrf.mxu0
        %v791 = vadd.f32 0.0, %v790
        %792 = vmatprep.mubr.f32.mxu0 0.0
        %793 = vmatmul.mubr.f32.gmra.mxu0 %v379
        %v794 = vpop.f32.mrf.mxu0
        %v795 = vadd.f32 0.0, %v794
        %v796 = vpop.f32.mrf.mxu0
        %v797 = vadd.f32 0.0, %v796
        %798 = vmatprep.mubr.f32.mxu0 0.0
        %799 = vmatmul.mubr.f32.gmra.mxu0 %v382
        %v800 = vpop.f32.mrf.mxu0
        %v801 = vadd.f32 0.0, %v800
        %v802 = vpop.f32.mrf.mxu0
        %v803 = vadd.f32 0.0, %v802
        %804 = vmatprep.mubr.f32.mxu0 0.0
        %805 = vmatmul.mubr.f32.gmra.mxu0 %v385
        %v806 = vpop.f32.mrf.mxu0
        %v807 = vadd.f32 0.0, %v806
        %v808 = vpop.f32.mrf.mxu0
        %v809 = vadd.f32 0.0, %v808
        %810 = vmatprep.mubr.f32.mxu0 0.0
        %811 = vmatmul.mubr.f32.gmra.mxu0 %v388
        %v812 = vpop.f32.mrf.mxu0
        %v813 = vadd.f32 0.0, %v812
        %v814 = vpop.f32.mrf.mxu0
        %v815 = vadd.f32 0.0, %v814
        %816 = vmatprep.mubr.f32.mxu0 0.0
        %817 = vmatmul.mubr.f32.gmra.mxu0 %v391
        %v818 = vpop.f32.mrf.mxu0
        %v819 = vadd.f32 0.0, %v818
        %v820 = vpop.f32.mrf.mxu0
        %v821 = vadd.f32 0.0, %v820
        %822 = vmatprep.mubr.f32.mxu0 0.0
        %823 = vmatmul.mubr.f32.gmra.mxu0 %v394
        %v824 = vpop.f32.mrf.mxu0
        %v825 = vadd.f32 0.0, %v824
        %v826 = vpop.f32.mrf.mxu0
        %v827 = vadd.f32 0.0, %v826
        %828 = vmatprep.mubr.f32.mxu0 0.0
        %829 = vmatmul.mubr.f32.gmra.mxu0 %v397
        %v830 = vpop.f32.mrf.mxu0
        %v831 = vadd.f32 0.0, %v830
        %v832 = vpop.f32.mrf.mxu0
        %v833 = vadd.f32 0.0, %v832
        %834 = vmatprep.mubr.f32.mxu0 0.0
        %835 = vmatmul.mubr.f32.gmra.mxu0 %v400
        %v836 = vpop.f32.mrf.mxu0
        %v837 = vadd.f32 0.0, %v836
        %v838 = vpop.f32.mrf.mxu0
        %v839 = vadd.f32 0.0, %v838
        %840 = vmatprep.mubr.f32.mxu0 0.0
        %841 = vmatmul.mubr.f32.gmra.mxu0 %v403
        %v842 = vpop.f32.mrf.mxu0
        %v843 = vadd.f32 0.0, %v842
        %v844 = vpop.f32.mrf.mxu0
        %v845 = vadd.f32 0.0, %v844
        %846 = vmatprep.mubr.f32.mxu0 0.0
        %847 = vmatmul.mubr.f32.gmra.mxu0 %v406
        %v848 = vpop.f32.mrf.mxu0
        %v849 = vadd.f32 0.0, %v848
        %v850 = vpop.f32.mrf.mxu0
        %v851 = vadd.f32 0.0, %v850
        %852 = vmatprep.mubr.f32.mxu0 0.0
        %853 = vmatmul.mubr.f32.gmra.mxu0 %v409
        %v854 = vpop.f32.mrf.mxu0
        %v855 = vadd.f32 0.0, %v854
        %v856 = vpop.f32.mrf.mxu0
        %v857 = vadd.f32 0.0, %v856
        %858 = vmatprep.mubr.f32.mxu0 0.0
        %859 = vmatmul.mubr.f32.gmra.mxu0 %v412
        %v860 = vpop.f32.mrf.mxu0
        %v861 = vadd.f32 0.0, %v860
        %v862 = vpop.f32.mrf.mxu0
        %v863 = vadd.f32 0.0, %v862
        %864 = vmatprep.mubr.f32.mxu0 0.0
        %865 = vmatmul.mubr.f32.gmra.mxu0 %v415
        %v866 = vpop.f32.mrf.mxu0
        %v867 = vadd.f32 0.0, %v866
        %v868 = vpop.f32.mrf.mxu0
        %v869 = vadd.f32 0.0, %v868
        %870 = vmatprep.mubr.f32.mxu0 0.0
        %871 = vmatmul.mubr.f32.gmra.mxu0 %v418
        %v872 = vpop.f32.mrf.mxu0
        %v873 = vadd.f32 0.0, %v872
        %v874 = vpop.f32.mrf.mxu0
        %v875 = vadd.f32 0.0, %v874
        %876 = vmatprep.mubr.f32.mxu0 0.0
        %877 = vmatmul.mubr.f32.gmra.mxu0 %v421
        %v878 = vpop.f32.mrf.mxu0
        %v879 = vadd.f32 0.0, %v878
        %v880 = vpop.f32.mrf.mxu0
        %v881 = vadd.f32 0.0, %v880
        %882 = vmatprep.mubr.f32.mxu0 0.0
        %883 = vmatmul.mubr.f32.gmra.mxu0 %v424
        %v884 = vpop.f32.mrf.mxu0
        %v885 = vadd.f32 0.0, %v884
        %v886 = vpop.f32.mrf.mxu0
        %v887 = vadd.f32 0.0, %v886
        %888 = vmatprep.mubr.f32.mxu0 0.0
        %889 = vmatmul.mubr.f32.gmra.mxu0 %v427
        %v890 = vpop.f32.mrf.mxu0
        %v891 = vadd.f32 0.0, %v890
        %v892 = vpop.f32.mrf.mxu0
        %v893 = vadd.f32 0.0, %v892
        %894 = vdwg.mxu0
        %895 = vst [vmem:[%s204] sm:$0xff] %v496
        %vm896 = vcmask 785408
        %897 = vst.msk [vmem:[%s204 + $0x8] sm:$0xff] %vm896, %v498
        %898 = vst [vmem:[%s204 + $0x10] sm:$0xff] %v502
        %899 = vst.msk [vmem:[%s204 + $0x18] sm:$0xff] %vm896, %v504
        %900 = vst [vmem:[%s204 + $0x20] sm:$0xff] %v508
        %901 = vst.msk [vmem:[%s204 + $0x28] sm:$0xff] %vm896, %v510
        %902 = vst [vmem:[%s204 + $0x30] sm:$0xff] %v514
        %903 = vst.msk [vmem:[%s204 + $0x38] sm:$0xff] %vm896, %v516
        %904 = vst [vmem:[%s204 + $0x40] sm:$0xff] %v520
        %905 = vst.msk [vmem:[%s204 + $0x48] sm:$0xff] %vm896, %v522
        %906 = vst [vmem:[%s204 + $0x50] sm:$0xff] %v526
        %907 = vst.msk [vmem:[%s204 + $0x58] sm:$0xff] %vm896, %v528
        %908 = vst [vmem:[%s204 + $0x60] sm:$0xff] %v532
        %909 = vst.msk [vmem:[%s204 + $0x68] sm:$0xff] %vm896, %v534
        %910 = vst [vmem:[%s204 + $0x70] sm:$0xff] %v538
        %911 = vst.msk [vmem:[%s204 + $0x78] sm:$0xff] %vm896, %v540
        %912 = vst [vmem:[%s204 + $0x80] sm:$0xff] %v544
        %913 = vst.msk [vmem:[%s204 + $0x88] sm:$0xff] %vm896, %v546
        %914 = vst [vmem:[%s204 + $0x90] sm:$0xff] %v550
        %915 = vst.msk [vmem:[%s204 + $0x98] sm:$0xff] %vm896, %v552
        %916 = vst [vmem:[%s204 + $0xa0] sm:$0xff] %v556
        %917 = vst.msk [vmem:[%s204 + $0xa8] sm:$0xff] %vm896, %v558
        %918 = vst [vmem:[%s204 + $0xb0] sm:$0xff] %v562
        %919 = vst.msk [vmem:[%s204 + $0xb8] sm:$0xff] %vm896, %v564
        %920 = vst [vmem:[%s204 + $0xc0] sm:$0xff] %v568
        %921 = vst.msk [vmem:[%s204 + $0xc8] sm:$0xff] %vm896, %v570
        %922 = vst [vmem:[%s204 + $0xd0] sm:$0xff] %v574
        %923 = vst.msk [vmem:[%s204 + $0xd8] sm:$0xff] %vm896, %v576
        %924 = vst [vmem:[%s204 + $0xe0] sm:$0xff] %v580
        %925 = vst.msk [vmem:[%s204 + $0xe8] sm:$0xff] %vm896, %v582
        %926 = vst [vmem:[%s204 + $0xf0] sm:$0xff] %v586
        %927 = vst.msk [vmem:[%s204 + $0xf8] sm:$0xff] %vm896, %v588
        %928 = vst [vmem:[%s204 + $0x100] sm:$0xff] %v592
        %929 = vst.msk [vmem:[%s204 + $0x108] sm:$0xff] %vm896, %v594
        %930 = vst [vmem:[%s204 + $0x110] sm:$0xff] %v598
        %931 = vst.msk [vmem:[%s204 + $0x118] sm:$0xff] %vm896, %v600
        %932 = vst [vmem:[%s204 + $0x120] sm:$0xff] %v604
        %933 = vst.msk [vmem:[%s204 + $0x128] sm:$0xff] %vm896, %v606
        %934 = vst [vmem:[%s204 + $0x130] sm:$0xff] %v610
        %935 = vst.msk [vmem:[%s204 + $0x138] sm:$0xff] %vm896, %v612
        %936 = vst [vmem:[%s204 + $0x140] sm:$0xff] %v616
        %937 = vst.msk [vmem:[%s204 + $0x148] sm:$0xff] %vm896, %v618
        %938 = vst [vmem:[%s204 + $0x150] sm:$0xff] %v622
        %939 = vst.msk [vmem:[%s204 + $0x158] sm:$0xff] %vm896, %v624
        %940 = vst [vmem:[%s204 + $0x160] sm:$0xff] %v628
        %941 = vst.msk [vmem:[%s204 + $0x168] sm:$0xff] %vm896, %v630
        %942 = vst [vmem:[%s204 + $0x170] sm:$0xff] %v634
        %943 = vst.msk [vmem:[%s204 + $0x178] sm:$0xff] %vm896, %v636
        %944 = vst [vmem:[%s204 + $0x180] sm:$0xff] %v640
        %945 = vst.msk [vmem:[%s204 + $0x188] sm:$0xff] %vm896, %v642
        %946 = vst [vmem:[%s204 + $0x190] sm:$0xff] %v646
        %947 = vst.msk [vmem:[%s204 + $0x198] sm:$0xff] %vm896, %v648
        %948 = vst [vmem:[%s204 + $0x1a0] sm:$0xff] %v652
        %949 = vst.msk [vmem:[%s204 + $0x1a8] sm:$0xff] %vm896, %v654
        %950 = vst [vmem:[%s204 + $0x1b0] sm:$0xff] %v658
        %951 = vst.msk [vmem:[%s204 + $0x1b8] sm:$0xff] %vm896, %v660
        %952 = vst [vmem:[%s204 + $0x1c0] sm:$0xff] %v729
        %953 = vst.msk [vmem:[%s204 + $0x1c8] sm:$0xff] %vm896, %v731
        %954 = vst [vmem:[%s204 + $0x1d0] sm:$0xff] %v735
        %955 = vst.msk [vmem:[%s204 + $0x1d8] sm:$0xff] %vm896, %v737
        %956 = vst [vmem:[%s204 + $0x1e0] sm:$0xff] %v741
        %957 = vst.msk [vmem:[%s204 + $0x1e8] sm:$0xff] %vm896, %v743
        %958 = vst [vmem:[%s204 + $0x1f0] sm:$0xff] %v747
        %959 = vst.msk [vmem:[%s204 + $0x1f8] sm:$0xff] %vm896, %v749
        %960 = vst [vmem:[%s204 + $0x200] sm:$0xff] %v753
        %961 = vst.msk [vmem:[%s204 + $0x208] sm:$0xff] %vm896, %v755
        %962 = vst [vmem:[%s204 + $0x210] sm:$0xff] %v759
        %963 = vst.msk [vmem:[%s204 + $0x218] sm:$0xff] %vm896, %v761
        %964 = vst [vmem:[%s204 + $0x220] sm:$0xff] %v765
        %965 = vst.msk [vmem:[%s204 + $0x228] sm:$0xff] %vm896, %v767
        %966 = vst [vmem:[%s204 + $0x230] sm:$0xff] %v771
        %967 = vst.msk [vmem:[%s204 + $0x238] sm:$0xff] %vm896, %v773
        %968 = vst [vmem:[%s204 + $0x240] sm:$0xff] %v777
        %969 = vst.msk [vmem:[%s204 + $0x248] sm:$0xff] %vm896, %v779
        %970 = vst [vmem:[%s204 + $0x250] sm:$0xff] %v783
        %971 = vst.msk [vmem:[%s204 + $0x258] sm:$0xff] %vm896, %v785
        %972 = vst [vmem:[%s204 + $0x260] sm:$0xff] %v789
        %973 = vst.msk [vmem:[%s204 + $0x268] sm:$0xff] %vm896, %v791
        %974 = vst [vmem:[%s204 + $0x270] sm:$0xff] %v795
        %975 = vst.msk [vmem:[%s204 + $0x278] sm:$0xff] %vm896, %v797
        %976 = vst [vmem:[%s204 + $0x280] sm:$0xff] %v801
        %977 = vst.msk [vmem:[%s204 + $0x288] sm:$0xff] %vm896, %v803
        %978 = vst [vmem:[%s204 + $0x290] sm:$0xff] %v807
        %979 = vst.msk [vmem:[%s204 + $0x298] sm:$0xff] %vm896, %v809
        %980 = vst [vmem:[%s204 + $0x2a0] sm:$0xff] %v813
        %981 = vst.msk [vmem:[%s204 + $0x2a8] sm:$0xff] %vm896, %v815
        %982 = vst [vmem:[%s204 + $0x2b0] sm:$0xff] %v819
        %983 = vst.msk [vmem:[%s204 + $0x2b8] sm:$0xff] %vm896, %v821
        %984 = vst [vmem:[%s204 + $0x2c0] sm:$0xff] %v825
        %985 = vst.msk [vmem:[%s204 + $0x2c8] sm:$0xff] %vm896, %v827
        %986 = vst [vmem:[%s204 + $0x2d0] sm:$0xff] %v831
        %987 = vst.msk [vmem:[%s204 + $0x2d8] sm:$0xff] %vm896, %v833
        %988 = vst [vmem:[%s204 + $0x2e0] sm:$0xff] %v837
        %989 = vst.msk [vmem:[%s204 + $0x2e8] sm:$0xff] %vm896, %v839
        %990 = vst [vmem:[%s204 + $0x2f0] sm:$0xff] %v843
        %991 = vst.msk [vmem:[%s204 + $0x2f8] sm:$0xff] %vm896, %v845
        %992 = vst [vmem:[%s204 + $0x300] sm:$0xff] %v849
        %993 = vst.msk [vmem:[%s204 + $0x308] sm:$0xff] %vm896, %v851
        %994 = vst [vmem:[%s204 + $0x310] sm:$0xff] %v855
        %995 = vst.msk [vmem:[%s204 + $0x318] sm:$0xff] %vm896, %v857
        %996 = vst [vmem:[%s204 + $0x320] sm:$0xff] %v861
        %997 = vst.msk [vmem:[%s204 + $0x328] sm:$0xff] %vm896, %v863
        %998 = vst [vmem:[%s204 + $0x330] sm:$0xff] %v867
        %999 = vst.msk [vmem:[%s204 + $0x338] sm:$0xff] %vm896, %v869
        %1000 = vst [vmem:[%s204 + $0x340] sm:$0xff] %v873
        %1001 = vst.msk [vmem:[%s204 + $0x348] sm:$0xff] %vm896, %v875
        %1002 = vst [vmem:[%s204 + $0x350] sm:$0xff] %v879
        %1003 = vst.msk [vmem:[%s204 + $0x358] sm:$0xff] %vm896, %v881
        %1004 = vst [vmem:[%s204 + $0x360] sm:$0xff] %v885
        %1005 = vst.msk [vmem:[%s204 + $0x368] sm:$0xff] %vm896, %v887
        %1006 = vst [vmem:[%s204 + $0x370] sm:$0xff] %v891
        %1007 = vst.msk [vmem:[%s204 + $0x378] sm:$0xff] %vm896, %v893
        %s1008 = sand.u32 %s97, 1
        %s1009 = scalar_lea.sflag [#allocation4], %s1008
        %s1010 = sand.u32 %s97, 1
        %s1011 = smul.addr %s1010, 896
        %s1012 = scalar_lea.vmem [#allocation7], %s1011
        // Predicated region
        $region41: #{tpu_custom_call.1} parent=31 // pred_check
          %p1013 = pneg %p107
        $region42: #{tpu_custom_call.1} parent=31 // pred_check_branch
          %1015 = sbr.rel (%p1013) target = $region44
        $region43: #{tpu_custom_call.1} parent=31 // pred_region
          %s1016 = smul.u32 2, %s21
          %s1018 = ssub.s32 14336, 14336
          %1019 = vsyncadd %s1009, %s1018
          %s1020 = smul.addr %s1016, 56
          %s1021 = smul.addr %s1020, 128
          %s1022 = scalar_lea.hbm %s3, %s1021
          %s1023 = sshll.u32 %s1012, 4
          %s1024 = int_to_ptr.vmem [resolvable:$true] %s1023
          %1029 = dma.vmem_to_hbm [thread:$0]  %s1024, 14336, %s1022, %s1009, 256, 256, 16
        $region44: #{tpu_custom_call.1} parent=31 // pred_fallthru
          _
      $region32: #{tpu_custom_call.1} parent=5 // pred_fallthru
        _
      %p1030 = scmp.le.s32.totalorder 2, %s16
      // Predicated region
      $region45: #{tpu_custom_call.1} parent=5 // pred_check
        %p1031 = pneg %p1030
      $region46: #{tpu_custom_call.1} parent=5 // pred_check_branch
        %1033 = sbr.rel (%p1031) target = $region48
      $region47: #{tpu_custom_call.1} parent=5 // pred_region
        %s1034 = ssub.s32 %s16, 2
        // Predicated region
        $region49: #{tpu_custom_call.1} parent=47 // pred_check
          %p1035 = pneg %p113
        $region50: #{tpu_custom_call.1} parent=47 // pred_check_branch
          %1037 = sbr.rel (%p1035) target = $region52
        $region51: #{tpu_custom_call.1} parent=47 // pred_region
          %s1038 = sand.u32 %s98, 1
          %s1039 = scalar_lea.sflag [#allocation4], %s1038
          %s1040 = sand.u32 %s98, 1
          %s1041 = smul.addr %s1040, 896
          %s1042 = scalar_lea.vmem [#allocation7], %s1041
          %1043 = dma.done %s1039, 14336
        $region52: #{tpu_custom_call.1} parent=47 // pred_fallthru
          _
      $region48: #{tpu_custom_call.1} parent=5 // pred_fallthru
        _
    $region6: #{tpu_custom_call.1} parent=1 // loop_footer
      %s20 = sadd.s32 1, %s16
    $region7: #{tpu_custom_call.1} parent=1 // loop_footer_branch
      %15 = sbr.rel target = $region3
    $region8: #{tpu_custom_call.1} parent=1 // loop_exit
      _
    %1044 = vsyncpa [#allocation3], 1
    %s1045 = scalar_lea.sflag [#allocation3], 1
    %1046 = vsyncpa %s1045, 1
    %1047 = vsyncpa [#allocation6], 1
    %1048 = vsyncpa [#allocation4], 1
    %s1049 = scalar_lea.sflag [#allocation4], 1
    %1050 = vsyncpa %s1049, 1

</llo_original>
